<compile_context>
chip_gen: v7x
topology: tpu7x:2x2x1
jax: 0.10.0
libtpu: 0.0.40
codegen_flags: <defaults>
</compile_context>

<pallas_src>
import math
import functools

import jax
import jax.numpy as jnp
from jax import lax
from jax.experimental import pallas as pl
from jax.experimental.pallas import tpu as pltpu


# --------------------------------------------------------------------------
# Hardware / tiling helpers (all static at trace time).
# --------------------------------------------------------------------------
def _round_up(x, m):
    return (x + m - 1) // m * m


def _device_kind():
    try:
        return jax.devices()[0].device_kind.lower()
    except Exception:
        return ""


def _vmem_limit_bytes(kind):
    """Per-generation scoped-VMEM limit with compiler headroom."""
    cap = None
    try:
        cap = int(pltpu.get_tpu_info().vmem_capacity_bytes)
    except Exception:
        cap = None
    if not cap:
        if "v7" in kind:
            cap = 64 << 20          # v7x: 64 MiB / TensorCore
        elif any(t in kind for t in ("v2", "v3")):
            cap = 16 << 20
        else:
            cap = 128 << 20         # v5e / v6e
    return min(int(cap * 3 // 4), 100 << 20)   # ~48 MiB v7x, ~96 MiB v5e/v6e


def _kv_tile(kind):
    # 256-wide kv tiles fill the 2x256^2 MXU on v6e/v7x; 128 on older gens.
    if any(t in kind for t in ("v2", "v3", "v4", "v5")):
        return 128
    return 256


def _contraction_tile(D):
    # Stage-1 contraction tile: whole D when small, otherwise a 128-multiple
    # so the resident weight block stays bounded (worked-matmul pattern).
    if D <= 1024 or D % 128 != 0:
        return D
    for dk in (512, 384, 256, 128):
        if D % dk == 0:
            return dk
    return D


def _choose_tiles(S, D, Dp, tk_base, vmem_limit, in_b, cmp_b, out_b):
    """Pick (tq, tk, S_pad): tk from MXU width, tq from the VMEM budget."""
    sub = 16                              # bf16 sublane packing (safe for f32)
    s16 = _round_up(S, sub)
    if s16 <= tk_base:                    # whole sequence fits one tile
        return s16, s16, s16
    tk = tk_base
    # Stage-2 VMEM accounting (per core).  Resident W_q/b_q and the
    # double-buffered K/V tiles are tq-independent; the rest scales with tq.
    resident = D * Dp * 4 + Dp * 4
    kv_tiles = 2 * 2 * tk * Dp * cmp_b
    per_row = (2 * D * in_b               # raw Q tile (double-buffered)
               + Dp * cmp_b               # projected-q scratch
               + Dp * 4                   # f32 accumulator
               + 2 * Dp * out_b           # output tile (double-buffered)
               + 3 * tk * 4)              # s / p / mask temporaries (f32)
    budget = int(vmem_limit * 0.8) - resident - kv_tiles
    tq_budget = tk
    if budget > 0:
        tq_budget = max(tk, (budget // per_row) // tk * tk)
    tq = min(tq_budget, _round_up(s16, tk), 1024)   # multiple of tk, capped
    s_pad = _round_up(S, tq)                        # also a multiple of tk
    return tq, tk, s_pad


def _dim_semantics(base, core_axis, is_v7):
    """On v7x mark one independent axis CORE_PARALLEL (2 TensorCores)."""
    if not is_v7:
        return tuple(base)
    core_sem = getattr(pltpu, "CORE_PARALLEL", None)
    if core_sem is None:
        return tuple(base)
    out = list(base)
    out[core_axis] = core_sem
    return tuple(out)


# --------------------------------------------------------------------------
# Stage 1: K / V projections (contraction-tiled, bf16 outputs).
# --------------------------------------------------------------------------
def _proj_kernel(x_ref, w_ref, b_ref, o_ref, acc_ref):
    kb = pl.program_id(3)

    @pl.when(kb == 0)
    def _():
        acc_ref[...] = jnp.zeros_like(acc_ref)

    # (tm, dk) @ (dk, Dp) -> f32 accumulator; weights pre-transposed in the
    # wrapper so there is no in-kernel transpose.
    acc_ref[...] += lax.dot_general(
        x_ref[...], w_ref[...],
        dimension_numbers=(((1,), (0,)), ((), ())),
        preferred_element_type=jnp.float32)

    @pl.when(kb == pl.num_programs(3) - 1)
    def _():
        o_ref[...] = (acc_ref[...] + b_ref[...].astype(jnp.float32)
                      ).astype(o_ref.dtype)


# --------------------------------------------------------------------------
# Stage 2: fused Q-projection + flash attention (online softmax).
# --------------------------------------------------------------------------
def _flash_kernel(xq_ref, wq_ref, bq_ref, k_ref, v_ref, o_ref,
                  q_sc, m_sc, l_sc, acc_sc, *, seq_valid, seq_pad, tk):
    ki = pl.program_id(2)

    @pl.when(ki == 0)
    def _():
        # Fused Q projection: one MXU pass per (batch, q-tile); the 1/sqrt(dk)
        # scale is already folded into W_q / b_q (in f32).  The projected Q
        # lives in VMEM for the whole kv sweep and never touches HBM.
        q = lax.dot_general(
            xq_ref[...], wq_ref[...],
            dimension_numbers=(((1,), (0,)), ((), ())),
            preferred_element_type=jnp.float32)
        q_sc[...] = (q + bq_ref[...].astype(jnp.float32)).astype(q_sc.dtype)
        m_sc[...] = jnp.full_like(m_sc, -jnp.inf)
        l_sc[...] = jnp.zeros_like(l_sc)
        acc_sc[...] = jnp.zeros_like(acc_sc)

    # scores = q_scaled @ K^T — contraction on the last dims (no transpose),
    # bf16 operands, f32 accumulation.
    s = lax.dot_general(
        q_sc[...], k_ref[...],
        dimension_numbers=(((1,), (1,)), ((), ())),
        preferred_element_type=jnp.float32)                    # (tq, tk) f32

    if seq_pad != seq_valid:
        # Load-bearing: padded K rows equal b_k after projection (x-pad is 0),
        # so they must be masked out of the softmax.  Only traced when the
        # sequence is actually padded.
        kpos = ki * tk + lax.broadcasted_iota(jnp.int32, s.shape, 1)
        s = jnp.where(kpos < seq_valid, s, -1e30)

    m_prev = m_sc[...]
    m_new = jnp.maximum(m_prev, jnp.max(s, axis=-1, keepdims=True))
    alpha = jnp.exp(m_prev - m_new)
    p = jnp.exp(s - m_new)
    l_sc[...] = alpha * l_sc[...] + jnp.sum(p, axis=-1, keepdims=True)
    acc_sc[...] = alpha * acc_sc[...] + lax.dot_general(
        p.astype(v_ref.dtype), v_ref[...],
        dimension_numbers=(((1,), (0,)), ((), ())),
        preferred_element_type=jnp.float32)
    m_sc[...] = m_new

    @pl.when(ki == pl.num_programs(2) - 1)
    def _():
        # EUP approximate reciprocal (free slot) + one Newton step on the
        # tiny (tq, 1) vector to recover f32 accuracy.
        inv = pl.reciprocal(l_sc[...], approx=True)
        inv = inv * (2.0 - l_sc[...] * inv)
        o_ref[...] = (acc_sc[...] * inv).astype(o_ref.dtype)


# --------------------------------------------------------------------------
# Wrapper.
# --------------------------------------------------------------------------
@jax.jit
def scaled_dot_product(Q, K, V, w_q, b_q, w_k, b_k, w_v, b_v):
    """Pallas TPU forward of the PyTorch ScaledDotProduct module (mask=None)."""
    B, S, D = Q.shape
    Dp = _round_up(D, 128)                       # lane-dense feature dim
    in_dtype = Q.dtype
    # MXU-native operand dtype for K/V/q tiles (f32 accumulation kept).
    cmp_dtype = jnp.bfloat16 if in_dtype == jnp.float32 else in_dtype
    out_dtype = in_dtype

    kind = _device_kind()
    is_v7 = "v7" in kind
    vmem_limit = _vmem_limit_bytes(kind)
    tk_base = _kv_tile(kind)

    in_b = jnp.dtype(in_dtype).itemsize
    cmp_b = jnp.dtype(cmp_dtype).itemsize
    out_b = jnp.dtype(out_dtype).itemsize
    tq, tk, S_pad = _choose_tiles(S, D, Dp, tk_base, vmem_limit,
                                  in_b, cmp_b, out_b)

    scale = 1.0 / math.sqrt(D)                   # d_k == d_model here

    def prep(w, b, s):
        # nn.Linear weight is (out, in); store (in, out) so the kernels never
        # transpose.  The scale fold happens in f32 (no pre-rounding), and
        # out-features are zero-padded to Dp for lane-dense stores.
        wt = jnp.pad(w.astype(jnp.float32).T * s, ((0, 0), (0, Dp - D)))
        bp = jnp.pad((b.astype(jnp.float32) * s).reshape(1, D),
                     ((0, 0), (0, Dp - D)))
        return wt, bp

    wq_t, bq_p = prep(w_q, b_q, scale)           # scale folded into Q proj
    wk_t, bk_p = prep(w_k, b_k, 1.0)
    wv_t, bv_p = prep(w_v, b_v, 1.0)
    W_kv = jnp.stack([wk_t, wv_t])               # (2, D, Dp) f32
    B_kv = jnp.stack([bk_p, bv_p])               # (2, 1, Dp) f32

    if S_pad != S:
        pad = ((0, 0), (0, S_pad - S), (0, 0))
        Q, K, V = jnp.pad(Q, pad), jnp.pad(K, pad), jnp.pad(V, pad)
    X_kv = jnp.stack([K, V])                     # (2, B, S_pad, D)

    # ---- stage 1: K / V projections ---------------------------------------
    tm = tq
    dk = _contraction_tile(D)
    n_k = D // dk
    stage1_core_axis = 1 if B > 1 else 2
    kv_proj = pl.pallas_call(
        _proj_kernel,
        out_shape=jax.ShapeDtypeStruct((2, B, S_pad, Dp), cmp_dtype),
        grid_spec=pltpu.PrefetchScalarGridSpec(
            num_scalar_prefetch=0,
            grid=(2, B, S_pad // tm, n_k),
            in_specs=[
                pl.BlockSpec((None, None, tm, dk),
                             lambda p, b, r, c: (p, b, r, c)),
                pl.BlockSpec((None, dk, Dp), lambda p, b, r, c: (p, c, 0)),
                pl.BlockSpec((None, 1, Dp), lambda p, b, r, c: (p, 0, 0)),
            ],
            out_specs=pl.BlockSpec((None, None, tm, Dp),
                                   lambda p, b, r, c: (p, b, r, 0)),
            scratch_shapes=[pltpu.VMEM((tm, Dp), jnp.float32)],
        ),
        compiler_params=pltpu.CompilerParams(
            dimension_semantics=_dim_semantics(
                ["parallel", "parallel", "parallel", "arbitrary"],
                stage1_core_axis, is_v7),
            vmem_limit_bytes=vmem_limit),
    )(X_kv, W_kv, B_kv)

    # ---- stage 2: fused Q-projection + flash attention ---------------------
    kernel = functools.partial(_flash_kernel, seq_valid=S, seq_pad=S_pad, tk=tk)
    stage2_core_axis = 0 if B > 1 else 1
    out = pl.pallas_call(
        kernel,
        out_shape=jax.ShapeDtypeStruct((B, S_pad, Dp), out_dtype),
        grid_spec=pltpu.PrefetchScalarGridSpec(
            num_scalar_prefetch=0,
            grid=(B, S_pad // tq, S_pad // tk),
            in_specs=[
                pl.BlockSpec((None, tq, D), lambda b, qi, ki: (b, qi, 0)),
                pl.BlockSpec((D, Dp), lambda b, qi, ki: (0, 0)),   # resident W_q
                pl.BlockSpec((1, Dp), lambda b, qi, ki: (0, 0)),   # resident b_q
                pl.BlockSpec((None, None, tk, Dp),
                             lambda b, qi, ki: (0, b, ki, 0)),     # K tiles
                pl.BlockSpec((None, None, tk, Dp),
                             lambda b, qi, ki: (1, b, ki, 0)),     # V tiles
            ],
            out_specs=pl.BlockSpec((None, tq, Dp), lambda b, qi, ki: (b, qi, 0)),
            scratch_shapes=[
                pltpu.VMEM((tq, Dp), cmp_dtype),   # projected q (bf16)
                pltpu.VMEM((tq, 1), jnp.float32),  # running max m
                pltpu.VMEM((tq, 1), jnp.float32),  # running denom l
                pltpu.VMEM((tq, Dp), jnp.float32), # running accumulator
            ],
        ),
        compiler_params=pltpu.CompilerParams(
            dimension_semantics=_dim_semantics(
                ["parallel", "parallel", "arbitrary"], stage2_core_axis, is_v7),
            vmem_limit_bytes=vmem_limit),
    )(Q, wq_t, bq_p, kv_proj, kv_proj)

    if S_pad != S or Dp != D:
        out = out[:, :S, :D]
    return out


# --------------------------------------------------------------------------
# Reference + self-test.
# --------------------------------------------------------------------------
def _reference(Q, K, V, w_q, b_q, w_k, b_k, w_v, b_v):
    Qp = Q @ w_q.T + b_q
    Kp = K @ w_k.T + b_k
    Vp = V @ w_v.T + b_v
    d_k = Kp.shape[-1]
    scores = jnp.einsum("bqd,bkd->bqk", Qp, Kp) / math.sqrt(d_k)
    probs = jax.nn.softmax(scores, axis=-1)
    return jnp.einsum("bqk,bkd->bqd", probs, Vp)


if __name__ == "__main__":
    batch, seq, d_model = 2, 8, 32
    head = 4  # stored but unused by the PyTorch forward(); kept for parity

    key = jax.random.PRNGKey(0)
    ks = jax.random.split(key, 9)

    # Deterministic nn.Linear-style init: U(-1/sqrt(d_model), 1/sqrt(d_model))
    bound = 1.0 / math.sqrt(d_model)
    w_q = jax.random.uniform(ks[0], (d_model, d_model), jnp.float32, -bound, bound)
    b_q = jax.random.uniform(ks[1], (d_model,), jnp.float32, -bound, bound)
    w_k = jax.random.uniform(ks[2], (d_model, d_model), jnp.float32, -bound, bound)
    b_k = jax.random.uniform(ks[3], (d_model,), jnp.float32, -bound, bound)
    w_v = jax.random.uniform(ks[4], (d_model, d_model), jnp.float32, -bound, bound)
    b_v = jax.random.uniform(ks[5], (d_model,), jnp.float32, -bound, bound)

    Q = jax.random.normal(ks[6], (batch, seq, d_model), jnp.float32)
    K = jax.random.normal(ks[7], (batch, seq, d_model), jnp.float32)
    V = jax.random.normal(ks[8], (batch, seq, d_model), jnp.float32)

    out = scaled_dot_product(Q, K, V, w_q, b_q, w_k, b_k, w_v, b_v)
    out = jax.block_until_ready(out)

    ref = _reference(Q, K, V, w_q, b_q, w_k, b_k, w_v, b_v)
    assert out.shape == (batch, seq, d_model)
    # bf16 K/V/q operands (MXU-native, per perf review) => tolerance ~1e-2.
    err = float(jnp.max(jnp.abs(out.astype(jnp.float32) - ref)))
    assert jnp.allclose(out, ref, atol=2e-2, rtol=2e-2), err

    print("KERNEL_OK")
</pallas_src>

<mosaic_0001>
module attributes {stable_mosaic.version = 11 : i64} {
  func.func @_proj_kernel(%arg0: i32, %arg1: i32, %arg2: i32, %arg3: i32, %arg4: memref<1x1x16x32xf32, #tpu.memory_space<vmem>>, %arg5: memref<1x32x128xf32, #tpu.memory_space<vmem>>, %arg6: memref<1x1x128xf32, #tpu.memory_space<vmem>>, %arg7: memref<1x1x16x128xbf16, #tpu.memory_space<vmem>>, %arg8: memref<16x128xf32, #tpu.memory_space<vmem>>) attributes {dimension_semantics = [#tpu.dimension_semantics<parallel>, #tpu.dimension_semantics<parallel>, #tpu.dimension_semantics<parallel>, #tpu.dimension_semantics<arbitrary>], iteration_bounds = array<i64: 2, 2, 1, 1>, scalar_prefetch = 0 : i64, scratch_operands = 1 : i64, tpu.core_type = #tpu.core_type<tc>, window_params = [{transform_indices = @transform_0, window_bounds = array<i64: 1, 1, 16, 32>}, {transform_indices = @transform_1, window_bounds = array<i64: 1, 32, 128>}, {transform_indices = @transform_2, window_bounds = array<i64: 1, 1, 128>}, {transform_indices = @transform_3, window_bounds = array<i64: 1, 1, 16, 128>}]} {
    %c0_i32 = arith.constant 0 : i32
    %0 = arith.cmpi eq, %arg3, %c0_i32 : i32
    %1 = arith.extui %0 : i1 to i32
    %c0_i32_0 = arith.constant 0 : i32
    %2 = arith.cmpi ne, %1, %c0_i32_0 : i32
    scf.if %2 {
      %cst_13 = arith.constant 0.000000e+00 : f32
      %14 = vector.broadcast %cst_13 : f32 to vector<16x128xf32>
      %c0_14 = arith.constant 0 : index
      %c0_15 = arith.constant 0 : index
      %15 = vector.load %arg8[%c0_14, %c0_15] : memref<16x128xf32, #tpu.memory_space<vmem>>, vector<16x128xf32>
      tpu.vector_store %arg8[%c0_14, %c0_15], %14 {strides = array<i32>} : memref<16x128xf32, #tpu.memory_space<vmem>>, vector<16x128xf32>,
    } else {
    }
    %c0 = arith.constant 0 : index
    %c0_1 = arith.constant 0 : index
    %3 = vector.load %arg8[%c0, %c0_1] : memref<16x128xf32, #tpu.memory_space<vmem>>, vector<16x128xf32>
    %c0_2 = arith.constant 0 : index
    %c0_3 = arith.constant 0 : index
    %c0_4 = arith.constant 0 : index
    %c0_5 = arith.constant 0 : index
    %4 = vector.load %arg4[%c0_2, %c0_3, %c0_4, %c0_5] : memref<1x1x16x32xf32, #tpu.memory_space<vmem>>, vector<1x1x16x32xf32>
    %5 = vector.shape_cast %4 : vector<1x1x16x32xf32> to vector<16x32xf32>
    %c0_6 = arith.constant 0 : index
    %c0_7 = arith.constant 0 : index
    %c0_8 = arith.constant 0 : index
    %6 = vector.load %arg5[%c0_6, %c0_7, %c0_8] : memref<1x32x128xf32, #tpu.memory_space<vmem>>, vector<1x32x128xf32>
    %7 = vector.shape_cast %6 : vector<1x32x128xf32> to vector<32x128xf32>
    %cst = arith.constant dense<0.000000e+00> : vector<16x128xf32>
    %8 = tpu.matmul %5, %7, %cst {dimension_numbers = #tpu.dot_dimension_numbers<[1], [0], [0], [1], [0, 0, 1, 1], [], []>} : vector<16x32xf32>, vector<32x128xf32>, vector<16x128xf32> -> vector<16x128xf32>
    %9 = arith.addf %3, %8 : vector<16x128xf32>
    %c0_9 = arith.constant 0 : index
    %c0_10 = arith.constant 0 : index
    %10 = vector.load %arg8[%c0_9, %c0_10] : memref<16x128xf32, #tpu.memory_space<vmem>>, vector<16x128xf32>
    tpu.vector_store %arg8[%c0_9, %c0_10], %9 {strides = array<i32>} : memref<16x128xf32, #tpu.memory_space<vmem>>, vector<16x128xf32>,
    %c0_i32_11 = arith.constant 0 : i32
    %11 = arith.cmpi eq, %arg3, %c0_i32_11 : i32
    %12 = arith.extui %11 : i1 to i32
    %c0_i32_12 = arith.constant 0 : i32
    %13 = arith.cmpi ne, %12, %c0_i32_12 : i32
    scf.if %13 {
      %c0_13 = arith.constant 0 : index
      %c0_14 = arith.constant 0 : index
      %14 = vector.load %arg8[%c0_13, %c0_14] : memref<16x128xf32, #tpu.memory_space<vmem>>, vector<16x128xf32>
      %c0_15 = arith.constant 0 : index
      %c0_16 = arith.constant 0 : index
      %c0_17 = arith.constant 0 : index
      %15 = vector.load %arg6[%c0_15, %c0_16, %c0_17] : memref<1x1x128xf32, #tpu.memory_space<vmem>>, vector<1x1x128xf32>
      %16 = vector.shape_cast %15 : vector<1x1x128xf32> to vector<1x128xf32>
      %17 = vector.broadcast %16 : vector<1x128xf32> to vector<16x128xf32>
      %18 = arith.addf %14, %17 : vector<16x128xf32>
      %19 = arith.truncf %18 : vector<16x128xf32> to vector<16x128xbf16>
      %c0_18 = arith.constant 0 : index
      %c0_19 = arith.constant 0 : index
      %c0_20 = arith.constant 0 : index
      %c0_21 = arith.constant 0 : index
      %20 = vector.load %arg7[%c0_18, %c0_19, %c0_20, %c0_21] : memref<1x1x16x128xbf16, #tpu.memory_space<vmem>>, vector<1x1x16x128xbf16>
      %21 = vector.shape_cast %20 : vector<1x1x16x128xbf16> to vector<16x128xbf16>
      %22 = vector.shape_cast %19 : vector<16x128xbf16> to vector<1x1x16x128xbf16>
      tpu.vector_store %arg7[%c0_18, %c0_19, %c0_20, %c0_21], %22 {strides = array<i32>} : memref<1x1x16x128xbf16, #tpu.memory_space<vmem>>, vector<1x1x16x128xbf16>,
    } else {
    }
    return
  }
  func.func @transform_0(%arg0: i32, %arg1: i32, %arg2: i32, %arg3: i32) -> (i32, i32, i32, i32) {
    %c0_i32 = arith.constant 0 : i32
    return %arg0, %arg1, %arg2, %arg3 : i32, i32, i32, i32
  }
  func.func @transform_1(%arg0: i32, %arg1: i32, %arg2: i32, %arg3: i32) -> (i32, i32, i32) {
    %c0_i32 = arith.constant 0 : i32
    %c0_i32_0 = arith.constant 0 : i32
    return %arg0, %arg3, %c0_i32 : i32, i32, i32
  }
  func.func @transform_2(%arg0: i32, %arg1: i32, %arg2: i32, %arg3: i32) -> (i32, i32, i32) {
    %c0_i32 = arith.constant 0 : i32
    %c0_i32_0 = arith.constant 0 : i32
    %c0_i32_1 = arith.constant 0 : i32
    return %arg0, %c0_i32, %c0_i32_0 : i32, i32, i32
  }
  func.func @transform_3(%arg0: i32, %arg1: i32, %arg2: i32, %arg3: i32) -> (i32, i32, i32, i32) {
    %c0_i32 = arith.constant 0 : i32
    %c0_i32_0 = arith.constant 0 : i32
    return %arg0, %arg1, %arg2, %c0_i32 : i32, i32, i32, i32
  }
}

module attributes {stable_mosaic.version = 11 : i64} {
  func.func @_flash_kernel(%arg0: i32, %arg1: i32, %arg2: i32, %arg3: memref<1x16x32xf32, #tpu.memory_space<vmem>>, %arg4: memref<32x128xf32, #tpu.memory_space<vmem>>, %arg5: memref<1x128xf32, #tpu.memory_space<vmem>>, %arg6: memref<1x1x16x128xbf16, #tpu.memory_space<vmem>>, %arg7: memref<1x1x16x128xbf16, #tpu.memory_space<vmem>>, %arg8: memref<1x16x128xf32, #tpu.memory_space<vmem>>, %arg9: memref<16x128xbf16, #tpu.memory_space<vmem>>, %arg10: memref<16x1xf32, #tpu.memory_space<vmem>>, %arg11: memref<16x1xf32, #tpu.memory_space<vmem>>, %arg12: memref<16x128xf32, #tpu.memory_space<vmem>>) attributes {dimension_semantics = [#tpu.dimension_semantics<parallel>, #tpu.dimension_semantics<parallel>, #tpu.dimension_semantics<arbitrary>], iteration_bounds = array<i64: 2, 1, 1>, scalar_prefetch = 0 : i64, scratch_operands = 4 : i64, tpu.core_type = #tpu.core_type<tc>, window_params = [{transform_indices = @transform_0, window_bounds = array<i64: 1, 16, 32>}, {pipeline_mode = #tpu.pipeline_mode<synchronous>, transform_indices = @transform_1, window_bounds = array<i64: 32, 128>}, {pipeline_mode = #tpu.pipeline_mode<synchronous>, transform_indices = @transform_2, window_bounds = array<i64: 1, 128>}, {transform_indices = @transform_3, window_bounds = array<i64: 1, 1, 16, 128>}, {transform_indices = @transform_4, window_bounds = array<i64: 1, 1, 16, 128>}, {transform_indices = @transform_5, window_bounds = array<i64: 1, 16, 128>}]} {
    %c0_i32 = arith.constant 0 : i32
    %0 = arith.cmpi eq, %arg2, %c0_i32 : i32
    %1 = arith.extui %0 : i1 to i32
    %c0_i32_0 = arith.constant 0 : i32
    %2 = arith.cmpi ne, %1, %c0_i32_0 : i32
    scf.if %2 {
      %c0_28 = arith.constant 0 : index
      %c0_29 = arith.constant 0 : index
      %c0_30 = arith.constant 0 : index
      %43 = vector.load %arg3[%c0_28, %c0_29, %c0_30] : memref<1x16x32xf32, #tpu.memory_space<vmem>>, vector<1x16x32xf32>
      %44 = vector.shape_cast %43 : vector<1x16x32xf32> to vector<16x32xf32>
      %c0_31 = arith.constant 0 : index
      %c0_32 = arith.constant 0 : index
      %45 = vector.load %arg4[%c0_31, %c0_32] : memref<32x128xf32, #tpu.memory_space<vmem>>, vector<32x128xf32>
      %cst_33 = arith.constant dense<0.000000e+00> : vector<16x128xf32>
      %46 = tpu.matmul %44, %45, %cst_33 {dimension_numbers = #tpu.dot_dimension_numbers<[1], [0], [0], [1], [0, 0, 1, 1], [], []>} : vector<16x32xf32>, vector<32x128xf32>, vector<16x128xf32> -> vector<16x128xf32>
      %c0_34 = arith.constant 0 : index
      %c0_35 = arith.constant 0 : index
      %47 = vector.load %arg5[%c0_34, %c0_35] : memref<1x128xf32, #tpu.memory_space<vmem>>, vector<1x128xf32>
      %48 = vector.broadcast %47 : vector<1x128xf32> to vector<16x128xf32>
      %49 = arith.addf %46, %48 : vector<16x128xf32>
      %50 = arith.truncf %49 : vector<16x128xf32> to vector<16x128xbf16>
      %c0_36 = arith.constant 0 : index
      %c0_37 = arith.constant 0 : index
      %51 = vector.load %arg9[%c0_36, %c0_37] : memref<16x128xbf16, #tpu.memory_space<vmem>>, vector<16x128xbf16>
      tpu.vector_store %arg9[%c0_36, %c0_37], %50 {strides = array<i32>} : memref<16x128xbf16, #tpu.memory_space<vmem>>, vector<16x128xbf16>,
      %cst_38 = arith.constant 0xFF800000 : f32
      %52 = vector.broadcast %cst_38 : f32 to vector<16x1xf32>
      %c0_39 = arith.constant 0 : index
      %c0_40 = arith.constant 0 : index
      %53 = vector.load %arg10[%c0_39, %c0_40] : memref<16x1xf32, #tpu.memory_space<vmem>>, vector<16x1xf32>
      tpu.vector_store %arg10[%c0_39, %c0_40], %52 {strides = array<i32>} : memref<16x1xf32, #tpu.memory_space<vmem>>, vector<16x1xf32>,
      %cst_41 = arith.constant 0.000000e+00 : f32
      %54 = vector.broadcast %cst_41 : f32 to vector<16x1xf32>
      %c0_42 = arith.constant 0 : index
      %c0_43 = arith.constant 0 : index
      %55 = vector.load %arg11[%c0_42, %c0_43] : memref<16x1xf32, #tpu.memory_space<vmem>>, vector<16x1xf32>
      tpu.vector_store %arg11[%c0_42, %c0_43], %54 {strides = array<i32>} : memref<16x1xf32, #tpu.memory_space<vmem>>, vector<16x1xf32>,
      %cst_44 = arith.constant 0.000000e+00 : f32
      %56 = vector.broadcast %cst_44 : f32 to vector<16x128xf32>
      %c0_45 = arith.constant 0 : index
      %c0_46 = arith.constant 0 : index
      %57 = vector.load %arg12[%c0_45, %c0_46] : memref<16x128xf32, #tpu.memory_space<vmem>>, vector<16x128xf32>
      tpu.vector_store %arg12[%c0_45, %c0_46], %56 {strides = array<i32>} : memref<16x128xf32, #tpu.memory_space<vmem>>, vector<16x128xf32>,
    } else {
    }
    %c0 = arith.constant 0 : index
    %c0_1 = arith.constant 0 : index
    %3 = vector.load %arg9[%c0, %c0_1] : memref<16x128xbf16, #tpu.memory_space<vmem>>, vector<16x128xbf16>
    %c0_2 = arith.constant 0 : index
    %c0_3 = arith.constant 0 : index
    %c0_4 = arith.constant 0 : index
    %c0_5 = arith.constant 0 : index
    %4 = vector.load %arg6[%c0_2, %c0_3, %c0_4, %c0_5] : memref<1x1x16x128xbf16, #tpu.memory_space<vmem>>, vector<1x1x16x128xbf16>
    %5 = vector.shape_cast %4 : vector<1x1x16x128xbf16> to vector<16x128xbf16>
    %cst = arith.constant dense<0.000000e+00> : vector<16x16xf32>
    %6 = tpu.matmul %3, %5, %cst {dimension_numbers = #tpu.dot_dimension_numbers<[1], [1], [0], [0], [0, 0, 1, 0], [], []>} : vector<16x128xbf16>, vector<16x128xbf16>, vector<16x16xf32> -> vector<16x16xf32>
    %c16_i32 = arith.constant 16 : i32
    %7 = arith.muli %arg2, %c16_i32 : i32
    %8 = tpu.iota {dimensions = array<i32: 1>} : vector<16x16xi32>
    %9 = vector.broadcast %7 : i32 to vector<16x16xi32>
    %10 = arith.addi %9, %8 : vector<16x16xi32>
    %c8_i32 = arith.constant 8 : i32
    %11 = vector.broadcast %c8_i32 : i32 to vector<16x16xi32>
    %12 = arith.cmpi slt, %10, %11 : vector<16x16xi32>
    %cst_6 = arith.constant -1.000000e+30 : f32
    %13 = vector.broadcast %cst_6 : f32 to vector<16x16xf32>
    %14 = arith.select %12, %6, %13 : vector<16x16xi1>, vector<16x16xf32>
    %c0_7 = arith.constant 0 : index
    %c0_8 = arith.constant 0 : index
    %15 = vector.load %arg10[%c0_7, %c0_8] : memref<16x1xf32, #tpu.memory_space<vmem>>, vector<16x1xf32>
    %cst_9 = arith.constant dense<0xFF800000> : vector<16xf32>
    %16 = vector.multi_reduction <maximumf>, %14, %cst_9 [1] : vector<16x16xf32> to vector<16xf32>
    %17 = vector.shape_cast %16 : vector<16xf32> to vector<16x1xf32>
    %18 = arith.maximumf %15, %17 : vector<16x1xf32>
    %19 = arith.subf %15, %18 : vector<16x1xf32>
    %20 = math.exp %19 : vector<16x1xf32>
    %21 = vector.broadcast %18 : vector<16x1xf32> to vector<16x16xf32>
    %22 = arith.subf %14, %21 : vector<16x16xf32>
    %23 = math.exp %22 : vector<16x16xf32>
    %c0_10 = arith.constant 0 : index
    %c0_11 = arith.constant 0 : index
    %24 = vector.load %arg11[%c0_10, %c0_11] : memref<16x1xf32, #tpu.memory_space<vmem>>, vector<16x1xf32>
    %25 = arith.mulf %20, %24 : vector<16x1xf32>
    %cst_12 = arith.constant dense<0.000000e+00> : vector<16xf32>
    %26 = vector.multi_reduction <add>, %23, %cst_12 [1] : vector<16x16xf32> to vector<16xf32>
    %27 = vector.shape_cast %26 : vector<16xf32> to vector<16x1xf32>
    %28 = arith.addf %25, %27 : vector<16x1xf32>
    %c0_13 = arith.constant 0 : index
    %c0_14 = arith.constant 0 : index
    %29 = vector.load %arg11[%c0_13, %c0_14] : memref<16x1xf32, #tpu.memory_space<vmem>>, vector<16x1xf32>
    tpu.vector_store %arg11[%c0_13, %c0_14], %28 {strides = array<i32>} : memref<16x1xf32, #tpu.memory_space<vmem>>, vector<16x1xf32>,
    %c0_15 = arith.constant 0 : index
    %c0_16 = arith.constant 0 : index
    %30 = vector.load %arg12[%c0_15, %c0_16] : memref<16x128xf32, #tpu.memory_space<vmem>>, vector<16x128xf32>
    %31 = vector.broadcast %20 : vector<16x1xf32> to vector<16x128xf32>
    %32 = arith.mulf %31, %30 : vector<16x128xf32>
    %33 = arith.truncf %23 : vector<16x16xf32> to vector<16x16xbf16>
    %c0_17 = arith.constant 0 : index
    %c0_18 = arith.constant 0 : index
    %c0_19 = arith.constant 0 : index
    %c0_20 = arith.constant 0 : index
    %34 = vector.load %arg7[%c0_17, %c0_18, %c0_19, %c0_20] : memref<1x1x16x128xbf16, #tpu.memory_space<vmem>>, vector<1x1x16x128xbf16>
    %35 = vector.shape_cast %34 : vector<1x1x16x128xbf16> to vector<16x128xbf16>
    %cst_21 = arith.constant dense<0.000000e+00> : vector<16x128xf32>
    %36 = tpu.matmul %33, %35, %cst_21 {dimension_numbers = #tpu.dot_dimension_numbers<[1], [0], [0], [1], [0, 0, 1, 1], [], []>} : vector<16x16xbf16>, vector<16x128xbf16>, vector<16x128xf32> -> vector<16x128xf32>
    %37 = arith.addf %32, %36 : vector<16x128xf32>
    %c0_22 = arith.constant 0 : index
    %c0_23 = arith.constant 0 : index
    %38 = vector.load %arg12[%c0_22, %c0_23] : memref<16x128xf32, #tpu.memory_space<vmem>>, vector<16x128xf32>
    tpu.vector_store %arg12[%c0_22, %c0_23], %37 {strides = array<i32>} : memref<16x128xf32, #tpu.memory_space<vmem>>, vector<16x128xf32>,
    %c0_24 = arith.constant 0 : index
    %c0_25 = arith.constant 0 : index
    %39 = vector.load %arg10[%c0_24, %c0_25] : memref<16x1xf32, #tpu.memory_space<vmem>>, vector<16x1xf32>
    tpu.vector_store %arg10[%c0_24, %c0_25], %18 {strides = array<i32>} : memref<16x1xf32, #tpu.memory_space<vmem>>, vector<16x1xf32>,
    %c0_i32_26 = arith.constant 0 : i32
    %40 = arith.cmpi eq, %arg2, %c0_i32_26 : i32
    %41 = arith.extui %40 : i1 to i32
    %c0_i32_27 = arith.constant 0 : i32
    %42 = arith.cmpi ne, %41, %c0_i32_27 : i32
    scf.if %42 {
      %c0_28 = arith.constant 0 : index
      %c0_29 = arith.constant 0 : index
      %43 = vector.load %arg11[%c0_28, %c0_29] : memref<16x1xf32, #tpu.memory_space<vmem>>, vector<16x1xf32>
      %44 = tpu.reciprocal %43 {approx = true} : vector<16x1xf32> -> vector<16x1xf32>
      %c0_30 = arith.constant 0 : index
      %c0_31 = arith.constant 0 : index
      %45 = vector.load %arg11[%c0_30, %c0_31] : memref<16x1xf32, #tpu.memory_space<vmem>>, vector<16x1xf32>
      %46 = arith.mulf %45, %44 : vector<16x1xf32>
      %cst_32 = arith.constant 2.000000e+00 : f32
      %47 = vector.broadcast %cst_32 : f32 to vector<16x1xf32>
      %48 = arith.subf %47, %46 : vector<16x1xf32>
      %49 = arith.mulf %44, %48 : vector<16x1xf32>
      %c0_33 = arith.constant 0 : index
      %c0_34 = arith.constant 0 : index
      %50 = vector.load %arg12[%c0_33, %c0_34] : memref<16x128xf32, #tpu.memory_space<vmem>>, vector<16x128xf32>
      %51 = vector.broadcast %49 : vector<16x1xf32> to vector<16x128xf32>
      %52 = arith.mulf %50, %51 : vector<16x128xf32>
      %c0_35 = arith.constant 0 : index
      %c0_36 = arith.constant 0 : index
      %c0_37 = arith.constant 0 : index
      %53 = vector.load %arg8[%c0_35, %c0_36, %c0_37] : memref<1x16x128xf32, #tpu.memory_space<vmem>>, vector<1x16x128xf32>
      %54 = vector.shape_cast %53 : vector<1x16x128xf32> to vector<16x128xf32>
      %55 = vector.shape_cast %52 : vector<16x128xf32> to vector<1x16x128xf32>
      tpu.vector_store %arg8[%c0_35, %c0_36, %c0_37], %55 {strides = array<i32>} : memref<1x16x128xf32, #tpu.memory_space<vmem>>, vector<1x16x128xf32>,
    } else {
    }
    return
  }
  func.func @transform_0(%arg0: i32, %arg1: i32, %arg2: i32) -> (i32, i32, i32) {
    %c0_i32 = arith.constant 0 : i32
    %c0_i32_0 = arith.constant 0 : i32
    return %arg0, %arg1, %c0_i32 : i32, i32, i32
  }
  func.func @transform_1(%arg0: i32, %arg1: i32, %arg2: i32) -> (i32, i32) {
    %c0_i32 = arith.constant 0 : i32
    %c0_i32_0 = arith.constant 0 : i32
    %c0_i32_1 = arith.constant 0 : i32
    return %c0_i32, %c0_i32_0 : i32, i32
  }
  func.func @transform_2(%arg0: i32, %arg1: i32, %arg2: i32) -> (i32, i32) {
    %c0_i32 = arith.constant 0 : i32
    %c0_i32_0 = arith.constant 0 : i32
    %c0_i32_1 = arith.constant 0 : i32
    return %c0_i32, %c0_i32_0 : i32, i32
  }
  func.func @transform_3(%arg0: i32, %arg1: i32, %arg2: i32) -> (i32, i32, i32, i32) {
    %c0_i32 = arith.constant 0 : i32
    %c0_i32_0 = arith.constant 0 : i32
    %c0_i32_1 = arith.constant 0 : i32
    return %c0_i32, %arg0, %arg2, %c0_i32_0 : i32, i32, i32, i32
  }
  func.func @transform_4(%arg0: i32, %arg1: i32, %arg2: i32) -> (i32, i32, i32, i32) {
    %c1_i32 = arith.constant 1 : i32
    %c0_i32 = arith.constant 0 : i32
    %c0_i32_0 = arith.constant 0 : i32
    return %c1_i32, %arg0, %arg2, %c0_i32 : i32, i32, i32, i32
  }
  func.func @transform_5(%arg0: i32, %arg1: i32, %arg2: i32) -> (i32, i32, i32) {
    %c0_i32 = arith.constant 0 : i32
    %c0_i32_0 = arith.constant 0 : i32
    return %arg0, %arg1, %c0_i32 : i32, i32, i32
  }
}

</mosaic_0001>

<llo_original>
// kernel: scaled_dot_product.2
$region0: #{scaled_dot_product.2}
  #allocation0 [shape = 'u32[]', space=smem, size = 0x4, offset = 0x4, fixed_abs, tag = 'smem constant byte address 0x4 - core index']
  #allocation1 [shape = 'u32[144,128]{1,0:T(1,128)}', space=vmem, size = 0x12000, scoped, tag = 'internal scratch']
  #allocation2 [shape = 'f32[16,128]{1,0:T(8,128)}', space=vmem, size = 0x2000, scoped, tag = 'scratch operand']
  %s0 = inlined_call_operand.hbm [shape: f32[2,2,16,32], index: 0, kind: input, shape index: {}]
  %s1 = inlined_call_operand.hbm [shape: f32[2,32,128], index: 1, kind: input, shape index: {}]
  %s2 = inlined_call_operand.hbm [shape: f32[2,1,128], index: 2, kind: input, shape index: {}]
  %s3 = inlined_call_operand.hbm [shape: bf16[2,2,16,128], index: 3, kind: output, shape index: {}]
  %s4 = sld [smem:[#allocation0]]
  $region65: #{scaled_dot_product.2} parent=0
    _
  %s6 = ssub.s32 1, %s4
  %s7 = scalar_select 0, %s6, %s4
  $region1: #{scaled_dot_product.2} parent=0
    #allocation3 [shape = 'u8[16384]{0}', space=vmem, size = 0x4000, scoped, tag = 'input window, operand 0']
    #allocation4 [shape = 's32[2]{0}', space=sflag, size = 0x8, scoped, tag = 'scoped memory for scaled_dot_product.2']
    #allocation5 [shape = 's32[2]{0}', space=sflag, size = 0x8, scoped, tag = 'scoped memory for scaled_dot_product.2']
    #allocation6 [shape = 'u8[32768]{0}', space=vmem, size = 0x8000, scoped, tag = 'input window, operand 1']
    #allocation7 [shape = 's32[2]{0}', space=sflag, size = 0x8, scoped, tag = 'scoped memory for scaled_dot_product.2']
    #allocation8 [shape = 'u8[1024]{0}', space=vmem, size = 0x400, scoped, tag = 'input window, operand 2']
    #allocation9 [shape = 'u8[8192]{0}', space=vmem, size = 0x2000, scoped, tag = 'output window, operand 0']
    %8 = vsyncpa [#allocation4], 0
    %s9 = scalar_lea.sflag [#allocation4], 1
    %10 = vsyncpa %s9, 0
    %11 = vsyncpa [#allocation7], 0
    %s12 = scalar_lea.sflag [#allocation7], 1
    %13 = vsyncpa %s12, 0
    %14 = vsyncpa [#allocation5], 0
    %s15 = scalar_lea.sflag [#allocation5], 1
    %16 = vsyncpa %s15, 0
    loop: start=0, step=1, limit=6
    $region2: #{scaled_dot_product.2} parent=1 // loop_pre_header
      _
    $region3: #{scaled_dot_product.2} parent=1 // loop_header
      %s18 = sphi 0, %s22
      %p19 = scmp.ge.s32.totalorder %s18, 6
      %s25 = sphi 0, %s51
      %s26 = sphi 0, %s47
      %s27 = sphi 0, %s43
      %s28 = sphi 0, %s39
      %s29 = sphi 0, %s25
      %s30 = sphi 0, %s26
      %s31 = sphi 0, %s27
      %s32 = sphi 0, %s28
      %s33 = sphi 0, %s29
      %s34 = sphi 0, %s30
      %s35 = sphi 0, %s31
      %s36 = sphi 0, %s32
      %s60 = sphi 0, %s62
      %s63 = sphi 0, %s60
      %s64 = sphi 0, %s63
      %s80 = sphi 0, %s64
      %s88 = sphi 0, %s90
      %s91 = sphi 0, %s88
      %s92 = sphi 0, %s91
      %s108 = sphi 0, %s92
      %s114 = sphi 0, %s116
      %s117 = sphi 0, %s114
      %s118 = sphi 0, %s117
      %s134 = sphi 0, %s118
      %s144 = sphi 0, %s146
      %s147 = sphi 0, %s144
      %s148 = sphi 0, %s147
      %s164 = sphi 0, %s148
    $region4: #{scaled_dot_product.2} parent=1 // loop_header_branch
      %21 = sbr.rel (%p19) target = $region8
    $region5: #{scaled_dot_product.2} parent=1 // loop_body
      %s23 = ssub.s32 %s18, 1
      %s24 = ssub.s32 %s18, 2
      %s37 = sadd.s32 1, %s28
      %p38 = scmp.ge.s32.totalorder %s37, 1
      %s39 = scalar_select %p38, 0, %s37
      %s40 = sadd.s32 1, %s27
      %s41 = scalar_select %p38, %s40, %s27
      %p42 = scmp.ge.s32.totalorder %s41, 1
      %s43 = scalar_select %p42, 0, %s41
      %s44 = sadd.s32 1, %s26
      %s45 = scalar_select %p42, %s44, %s26
      %p46 = scmp.ge.s32.totalorder %s45, 2
      %s47 = scalar_select %p46, 0, %s45
      %s48 = sadd.s32 1, %s25
      %s49 = scalar_select %p46, %s48, %s25
      %p50 = scmp.ge.s32.totalorder %s49, 2
      %s51 = scalar_select %p50, 0, %s49
      %s52 = ssub.s32 %s25, %s51
      %s53 = ssub.s32 %s26, %s47
      %s54 = sor.u32 %s52, %s53
      %s55 = ssub.s32 %s27, %s43
      %s56 = sor.u32 %s54, %s55
      %s57 = ssub.s32 %s28, %s39
      %s58 = sor.u32 %s56, %s57
      %p59 = scmp.eq.s32.totalorder %s58, 0
      %s61 = sadd.s32 %s60, 1
      %s62 = scalar_select %p59, %s60, %s61
      %p65 = pneg %p59
      %p66 = scmp.eq.s32.totalorder %s18, 3
      %p67 = por %p65, %p66
      %p68 = scmp.ne.s32.totalorder %s60, %s63
      %p69 = scmp.eq.s32.totalorder %s18, 0
      %p70 = por %p68, %p69
      %p71 = scmp.ne.s32.totalorder %s60, %s63
      %p72 = scmp.eq.s32.totalorder %s23, 3
      %p73 = por %p71, %p72
      %p74 = scmp.ne.s32.totalorder %s63, %s64
      %p75 = scmp.eq.s32.totalorder %s23, 0
      %p76 = por %p74, %p75
      %p77 = scmp.ne.s32.totalorder %s63, %s64
      %p78 = scmp.eq.s32.totalorder %s24, 3
      %p79 = por %p77, %p78
      %p81 = scmp.ne.s32.totalorder %s64, %s80
      %p82 = scmp.eq.s32.totalorder %s24, 0
      %p83 = por %p81, %p82
      %s84 = ssub.s32 %s25, %s51
      %s85 = ssub.s32 %s28, %s39
      %s86 = sor.u32 %s84, %s85
      %p87 = scmp.eq.s32.totalorder %s86, 0
      %s89 = sadd.s32 %s88, 1
      %s90 = scalar_select %p87, %s88, %s89
      %p93 = pneg %p87
      %p94 = scmp.eq.s32.totalorder %s18, 3
      %p95 = por %p93, %p94
      %p96 = scmp.ne.s32.totalorder %s88, %s91
      %p97 = scmp.eq.s32.totalorder %s18, 0
      %p98 = por %p96, %p97
      %p99 = scmp.ne.s32.totalorder %s88, %s91
      %p100 = scmp.eq.s32.totalorder %s23, 3
      %p101 = por %p99, %p100
      %p102 = scmp.ne.s32.totalorder %s91, %s92
      %p103 = scmp.eq.s32.totalorder %s23, 0
      %p104 = por %p102, %p103
      %p105 = scmp.ne.s32.totalorder %s91, %s92
      %p106 = scmp.eq.s32.totalorder %s24, 3
      %p107 = por %p105, %p106
      %p109 = scmp.ne.s32.totalorder %s92, %s108
      %p110 = scmp.eq.s32.totalorder %s24, 0
      %p111 = por %p109, %p110
      %s112 = ssub.s32 %s25, %s51
      %p113 = scmp.eq.s32.totalorder %s112, 0
      %s115 = sadd.s32 %s114, 1
      %s116 = scalar_select %p113, %s114, %s115
      %p119 = pneg %p113
      %p120 = scmp.eq.s32.totalorder %s18, 3
      %p121 = por %p119, %p120
      %p122 = scmp.ne.s32.totalorder %s114, %s117
      %p123 = scmp.eq.s32.totalorder %s18, 0
      %p124 = por %p122, %p123
      %p125 = scmp.ne.s32.totalorder %s114, %s117
      %p126 = scmp.eq.s32.totalorder %s23, 3
      %p127 = por %p125, %p126
      %p128 = scmp.ne.s32.totalorder %s117, %s118
      %p129 = scmp.eq.s32.totalorder %s23, 0
      %p130 = por %p128, %p129
      %p131 = scmp.ne.s32.totalorder %s117, %s118
      %p132 = scmp.eq.s32.totalorder %s24, 3
      %p133 = por %p131, %p132
      %p135 = scmp.ne.s32.totalorder %s118, %s134
      %p136 = scmp.eq.s32.totalorder %s24, 0
      %p137 = por %p135, %p136
      %s138 = ssub.s32 %s25, %s51
      %s139 = ssub.s32 %s26, %s47
      %s140 = sor.u32 %s138, %s139
      %s141 = ssub.s32 %s27, %s43
      %s142 = sor.u32 %s140, %s141
      %p143 = scmp.eq.s32.totalorder %s142, 0
      %s145 = sadd.s32 %s144, 1
      %s146 = scalar_select %p143, %s144, %s145
      %p149 = pneg %p143
      %p150 = scmp.eq.s32.totalorder %s18, 3
      %p151 = por %p149, %p150
      %p152 = scmp.ne.s32.totalorder %s144, %s147
      %p153 = scmp.eq.s32.totalorder %s18, 0
      %p154 = por %p152, %p153
      %p155 = scmp.ne.s32.totalorder %s144, %s147
      %p156 = scmp.eq.s32.totalorder %s23, 3
      %p157 = por %p155, %p156
      %p158 = scmp.ne.s32.totalorder %s147, %s148
      %p159 = scmp.eq.s32.totalorder %s23, 0
      %p160 = por %p158, %p159
      %p161 = scmp.ne.s32.totalorder %s147, %s148
      %p162 = scmp.eq.s32.totalorder %s24, 3
      %p163 = por %p161, %p162
      %p165 = scmp.ne.s32.totalorder %s148, %s164
      %p166 = scmp.eq.s32.totalorder %s24, 0
      %p167 = por %p165, %p166
      %p168 = scmp.le.s32.totalorder 1, %s18
      %p169 = scmp.lt.s32.totalorder %s18, 5
      %p170 = pnand %p168, %p169
      %p171 = pneg %p170
      // Predicated region
      $region9: #{scaled_dot_product.2} parent=5 // pred_check
        _
      $region10: #{scaled_dot_product.2} parent=5 // pred_check_branch
        %173 = sbr.rel (%p170) target = $region12
      $region11: #{scaled_dot_product.2} parent=5 // pred_region
        %s174 = ssub.s32 %s18, 1
      $region12: #{scaled_dot_product.2} parent=5 // pred_fallthru
        _
      %p175 = scmp.lt.s32.totalorder %s18, 4
      // Predicated region
      $region13: #{scaled_dot_product.2} parent=5 // pred_check
        %p176 = pneg %p175
      $region14: #{scaled_dot_product.2} parent=5 // pred_check_branch
        %178 = sbr.rel (%p176) target = $region16
      $region15: #{scaled_dot_product.2} parent=5 // pred_region
        // Predicated region
        $region17: #{scaled_dot_product.2} parent=15 // pred_check
          %p179 = pneg %p70
        $region18: #{scaled_dot_product.2} parent=15 // pred_check_branch
          %181 = sbr.rel (%p179) target = $region20
        $region19: #{scaled_dot_product.2} parent=15 // pred_region
          %s182 = sand.u32 %s60, 1
          %s183 = scalar_lea.sflag [#allocation4], %s182
          %s184 = sand.u32 %s60, 1
          %s185 = smul.addr %s184, 16
          %s186 = scalar_lea.vmem [#allocation3], %s185
          %s187 = smul.u32 2, %s27
          %s189 = ssub.s32 256, 256
          %190 = vsyncadd %s183, %s189
          %s191 = sadd.s32 %s28, %s187
          %s192 = smul.addr %s26, 2
          %s193 = sadd.s32 %s191, %s192
          %s194 = smul.addr %s25, 4
          %s195 = sadd.s32 %s193, %s194
          %s196 = smul.addr %s195, 128
          %s197 = scalar_lea.hbm %s0, %s196
          %s198 = sshll.u32 %s186, 4
          %s199 = int_to_ptr.vmem [resolvable:$true] %s198
          %204 = dma.hbm_to_vmem [thread:$0]  %s197, 256, %s199, %s183, 128, 128, 8
        $region20: #{scaled_dot_product.2} parent=15 // pred_fallthru
          _
        // Predicated region
        $region21: #{scaled_dot_product.2} parent=15 // pred_check
          %p205 = pneg %p98
        $region22: #{scaled_dot_product.2} parent=15 // pred_check_branch
          %207 = sbr.rel (%p205) target = $region24
        $region23: #{scaled_dot_product.2} parent=15 // pred_region
          %s208 = sand.u32 %s18, 1
          %s209 = scalar_lea.sflag [#allocation7], %s208
          %s210 = sand.u32 %s88, 1
          %s211 = smul.addr %s210, 32
          %s212 = scalar_lea.vmem [#allocation6], %s211
          %s213 = smul.u32 4, %s28
          %s215 = ssub.s32 512, 512
          %216 = vsyncadd %s209, %s215
          %s217 = smul.addr %s25, 4
          %s218 = sadd.s32 %s213, %s217
          %s219 = smul.addr %s218, 128
          %s220 = scalar_lea.hbm %s1, %s219
          %s221 = sshll.u32 %s212, 4
          %s222 = int_to_ptr.vmem [resolvable:$true] %s221
          %227 = dma.hbm_to_vmem [thread:$0]  %s220, 512, %s222, %s209, 128, 128, 8
        $region24: #{scaled_dot_product.2} parent=15 // pred_fallthru
          _
        // Predicated region
        $region25: #{scaled_dot_product.2} parent=15 // pred_check
          %p228 = pneg %p124
        $region26: #{scaled_dot_product.2} parent=15 // pred_check_branch
          %230 = sbr.rel (%p228) target = $region28
        $region27: #{scaled_dot_product.2} parent=15 // pred_region
          %s231 = sand.u32 %s18, 1
          %s232 = scalar_lea.sflag [#allocation7], %s231
          %s233 = sand.u32 %s114, 1
          %s234 = scalar_lea.vmem [#allocation8], %s233
          %s236 = ssub.s32 16, 16
          %237 = vsyncadd %s232, %s236
          %s238 = smul.addr %s25, 16
          %s239 = scalar_lea.hbm %s2, %s238
          %s241 = sshll.u32 %s234, 4
          %s242 = int_to_ptr.vmem [resolvable:$true] %s241
          %244 = dma.hbm_to_vmem [thread:$0]  %s239, 16, %s242, %s232
        $region28: #{scaled_dot_product.2} parent=15 // pred_fallthru
          _
      $region16: #{scaled_dot_product.2} parent=5 // pred_fallthru
        _
      %p245 = scmp.le.s32.totalorder 1, %s18
      %p246 = scmp.lt.s32.totalorder %s18, 5
      %p247 = pnand %p245, %p246
      %p248 = pneg %p247
      // Predicated region
      $region29: #{scaled_dot_product.2} parent=5 // pred_check
        _
      $region30: #{scaled_dot_product.2} parent=5 // pred_check_branch
        %250 = sbr.rel (%p247) target = $region32
      $region31: #{scaled_dot_product.2} parent=5 // pred_region
        %s251 = ssub.s32 %s18, 1
        %s252 = sand.u32 %s63, 1
        %s253 = scalar_lea.sflag [#allocation4], %s252
        %s254 = sand.u32 %s63, 1
        %s255 = smul.addr %s254, 16
        %s256 = scalar_lea.vmem [#allocation3], %s255
        // Predicated region
        $region33: #{scaled_dot_product.2} parent=31 // pred_check
          %p257 = pneg %p76
        $region34: #{scaled_dot_product.2} parent=31 // pred_check_branch
          %259 = sbr.rel (%p257) target = $region36
        $region35: #{scaled_dot_product.2} parent=31 // pred_region
          %260 = dma.done %s253, 256
        $region36: #{scaled_dot_product.2} parent=31 // pred_fallthru
          _
        %s261 = sand.u32 %s23, 1
        %s262 = scalar_lea.sflag [#allocation7], %s261
        %s263 = sand.u32 %s91, 1
        %s264 = smul.addr %s263, 32
        %s265 = scalar_lea.vmem [#allocation6], %s264
        // Predicated region
        $region37: #{scaled_dot_product.2} parent=31 // pred_check
          %p266 = pneg %p104
        $region38: #{scaled_dot_product.2} parent=31 // pred_check_branch
          %268 = sbr.rel (%p266) target = $region40
        $region39: #{scaled_dot_product.2} parent=31 // pred_region
          %269 = dma.done %s262, 512
        $region40: #{scaled_dot_product.2} parent=31 // pred_fallthru
          _
        %s270 = sand.u32 %s23, 1
        %s271 = scalar_lea.sflag [#allocation7], %s270
        %s272 = sand.u32 %s117, 1
        %s273 = scalar_lea.vmem [#allocation8], %s272
        // Predicated region
        $region41: #{scaled_dot_product.2} parent=31 // pred_check
          %p274 = pneg %p130
        $region42: #{scaled_dot_product.2} parent=31 // pred_check_branch
          %276 = sbr.rel (%p274) target = $region44
        $region43: #{scaled_dot_product.2} parent=31 // pred_region
          %277 = dma.done %s271, 16
        $region44: #{scaled_dot_product.2} parent=31 // pred_fallthru
          _
        %s278 = sand.u32 %s63, 1
        %s279 = scalar_lea.sflag [#allocation4], %s278
        %s280 = sand.u32 %s63, 1
        %s281 = smul.addr %s280, 16
        %s282 = scalar_lea.vmem [#allocation3], %s281
        %p283 = pneg %p76
        %p284 = pneg %p73
        %s285 = sand.u32 %s23, 1
        %s286 = scalar_lea.sflag [#allocation7], %s285
        %s287 = sand.u32 %s91, 1
        %s288 = smul.addr %s287, 32
        %s289 = scalar_lea.vmem [#allocation6], %s288
        %p290 = pneg %p104
        %p291 = pneg %p101
        %s292 = sand.u32 %s23, 1
        %s293 = scalar_lea.sflag [#allocation7], %s292
        %s294 = sand.u32 %s117, 1
        %s295 = scalar_lea.vmem [#allocation8], %s294
        %p296 = pneg %p130
        %p297 = pneg %p127
        %p298 = pneg %p160
        %p299 = pneg %p157
        %s300 = sand.u32 %s147, 1
        %s301 = scalar_lea.sflag [#allocation5], %s300
        %s302 = sand.u32 %s147, 1
        %s303 = smul.addr %s302, 8
        %s304 = scalar_lea.vmem [#allocation9], %s303
        %s305 = smul.u32 2, %s31
        %s306 = smul.u32 4, %s32
        %s307 = smul.u32 2, %s31
        %p308 = scmp.eq.s32.totalorder %s32, 0
        // Predicated region
        $region45: #{scaled_dot_product.2} parent=31 // pred_check
          %p309 = pneg %p308
        $region46: #{scaled_dot_product.2} parent=31 // pred_check_branch
          %311 = sbr.rel (%p309) target = $region48
        $region47: #{scaled_dot_product.2} parent=31 // pred_region
          %312 = vst [vmem:[#allocation2] sm:$0xff] 0.0
          %313 = vst [vmem:[#allocation2 + $0x8] sm:$0xff] 0.0
        $region48: #{scaled_dot_product.2} parent=31 // pred_fallthru
          _
        %v314 = vld [vmem:[#allocation2] sm:$0xff]
        %v315 = vld [vmem:[#allocation2 + $0x8] sm:$0xff]
        %v316 = vld [vmem:[%s256] sm:$0xff]
        %v317 = vld [vmem:[%s256 + $0x8] sm:$0xff]
        %v318 = vld [vmem:[%s265] sm:$0xff]
        %v319 = vld [vmem:[%s265 + $0x8] sm:$0xff]
        %v320 = vld [vmem:[%s265 + $0x10] sm:$0xff]
        %v321 = vld [vmem:[%s265 + $0x18] sm:$0xff]
        %vm322 = vcmask 261120
        %v324 = vsel %vm322, %v316, 0
        %v327 = vsel %vm322, %v317, 0
        %329 = vmatprep.subr.mxu0 0.0
        %330 = vmatpush1.msra.mxu0 %v318
        %331 = vmatprep.subr.mxu0 0.0
        %332 = vmatpush1.msra.mxu0 %v319
        %333 = vmatprep.subr.mxu0 0.0
        %334 = vmatpush1.msra.mxu0 %v320
        %335 = vmatprep.subr.mxu0 0.0
        %336 = vmatpush1.msra.mxu0 %v321
        %337 = vmatprep.subr.mxu0 0.0
        %338 = vmatpush1.msra.mxu0 0.0
        %339 = vmatprep.subr.mxu0 0.0
        %340 = vmatpush1.msra.mxu0 0.0
        %341 = vmatprep.subr.mxu0 0.0
        %342 = vmatpush1.msra.mxu0 0.0
        %343 = vmatprep.subr.mxu0 0.0
        %344 = vmatpush1.msra.mxu0 0.0
        %345 = vmatprep.subr.mxu0 0.0
        %346 = vmatpush1.msra.mxu0 0.0
        %347 = vmatprep.subr.mxu0 0.0
        %348 = vmatpush1.msra.mxu0 0.0
        %349 = vmatprep.subr.mxu0 0.0
        %350 = vmatpush1.msra.mxu0 0.0
        %351 = vmatprep.subr.mxu0 0.0
        %352 = vmatpush1.msra.mxu0 0.0
        %353 = vmatprep.subr.mxu0 0.0
        %354 = vmatpush1.msra.mxu0 0.0
        %355 = vmatprep.subr.mxu0 0.0
        %356 = vmatpush1.msra.mxu0 0.0
        %357 = vmatprep.subr.mxu0 0.0
        %358 = vmatpush1.msra.mxu0 0.0
        %359 = vmatprep.subr.mxu0 0.0
        %360 = vmatpush1.msra.mxu0 0.0
        %361 = vmatprep.subr.mxu0 0.0
        %362 = vmatpush1.msra.mxu0 0.0
        %363 = vmatprep.subr.mxu0 0.0
        %364 = vmatpush1.msra.mxu0 0.0
        %365 = vmatprep.subr.mxu0 0.0
        %366 = vmatpush1.msra.mxu0 0.0
        %367 = vmatprep.subr.mxu0 0.0
        %368 = vmatpush1.msra.mxu0 0.0
        %369 = vmatprep.subr.mxu0 0.0
        %370 = vmatpush1.msra.mxu0 0.0
        %371 = vmatprep.subr.mxu0 0.0
        %372 = vmatpush1.msra.mxu0 0.0
        %373 = vmatprep.subr.mxu0 0.0
        %374 = vmatpush1.msra.mxu0 0.0
        %375 = vmatprep.subr.mxu0 0.0
        %376 = vmatpush1.msra.mxu0 0.0
        %377 = vmatprep.subr.mxu0 0.0
        %378 = vmatpush1.msra.mxu0 0.0
        %379 = vmatprep.subr.mxu0 0.0
        %380 = vmatpush1.msra.mxu0 0.0
        %381 = vmatprep.subr.mxu0 0.0
        %382 = vmatpush1.msra.mxu0 0.0
        %383 = vmatprep.subr.mxu0 0.0
        %384 = vmatpush1.msra.mxu0 0.0
        %385 = vmatprep.subr.mxu0 0.0
        %386 = vmatpush1.msra.mxu0 0.0
        %387 = vmatprep.subr.mxu0 0.0
        %388 = vmatpush1.msra.mxu0 0.0
        %389 = vmatprep.subr.mxu0 0.0
        %390 = vmatpush1.msra.mxu0 0.0
        %391 = vmatprep.subr.mxu0 0.0
        %392 = vmatpush1.msra.mxu0 0.0
        %393 = vmatprep.mubr.f32.mxu0 0.0
        %394 = vmatmul.mubr.f32.gmra.mrb[0].mxu0 %v324
        %v395 = vpop.f32.mrb[0].mxu0
        %v396 = vadd.f32 0.0, %v395
        %v397 = vpop.f32.mrb[0].mxu0
        %398 = vmatprep.mubr.f32.mxu0 0.0
        %399 = vmatmul.mubr.f32.gmra.mrb[0].mxu0 %v327
        %v400 = vpop.f32.mrb[0].mxu0
        %v401 = vadd.f32 0.0, %v400
        %v402 = vpop.f32.mrb[0].mxu0
        %403 = vdwg.mxu0
        %v404 = vadd.f32 %v314, %v396
        %v405 = vadd.f32 %v315, %v401
        %406 = vst [vmem:[#allocation2] sm:$0xff] %v404
        %407 = vst [vmem:[#allocation2 + $0x8] sm:$0xff] %v405
        // Predicated region
        $region49: #{scaled_dot_product.2} parent=31 // pred_check
          %p408 = pneg %p308
        $region50: #{scaled_dot_product.2} parent=31 // pred_check_branch
          %410 = sbr.rel (%p408) target = $region52
        $region51: #{scaled_dot_product.2} parent=31 // pred_region
          %v411 = vld [vmem:[#allocation2] sm:$0xff]
          %v412 = vld [vmem:[#allocation2 + $0x8] sm:$0xff]
          %v413 = vld [vmem:[%s273] sm:$0x1]
          %v415 = vlaneseq
          %v416 = vshrl.u32 %v415, 7
          %v417 = vsub.s32 0, %v416
          %v418 = vrot.slane %v413, %v417
          %v420 = vadd.f32 %v411, %v418
          %v421 = vadd.f32 %v412, %v418
          %v422 = vpack.c.bf16 %v421, %v420
          %v424 = vunpack.c.l.b16 %v422
          %v425 = vunpack.c.h.b16 %v422
          %v426 = vpack.c.b16 %v424, %v424
          %v427 = vpack.c.b16 %v425, %v425
          %430 = vst [vmem:[%s304] sm:$0xf] %v426
          %431 = vst [vmem:[%s304 + $0x4] sm:$0xf] %v427
        $region52: #{scaled_dot_product.2} parent=31 // pred_fallthru
          _
        %s432 = sand.u32 %s147, 1
        %s433 = scalar_lea.sflag [#allocation5], %s432
        %s434 = sand.u32 %s147, 1
        %s435 = smul.addr %s434, 8
        %s436 = scalar_lea.vmem [#allocation9], %s435
        // Predicated region
        $region53: #{scaled_dot_product.2} parent=31 // pred_check
          %p437 = pneg %p157
        $region54: #{scaled_dot_product.2} parent=31 // pred_check_branch
          %439 = sbr.rel (%p437) target = $region56
        $region55: #{scaled_dot_product.2} parent=31 // pred_region
          %s440 = smul.u32 2, %s31
          %s442 = ssub.s32 128, 128
          %443 = vsyncadd %s433, %s442
          %s444 = smul.addr %s30, 2
          %s445 = sadd.s32 %s440, %s444
          %s446 = smul.addr %s29, 4
          %s447 = sadd.s32 %s445, %s446
          %s448 = smul.addr %s447, 64
          %s449 = scalar_lea.hbm %s3, %s448
          %s450 = sshll.u32 %s436, 4
          %s451 = int_to_ptr.vmem [resolvable:$true] %s450
          %456 = dma.vmem_to_hbm [thread:$0]  %s451, 128, %s449, %s433, 64, 64, 4
        $region56: #{scaled_dot_product.2} parent=31 // pred_fallthru
          _
      $region32: #{scaled_dot_product.2} parent=5 // pred_fallthru
        _
      %p457 = scmp.le.s32.totalorder 2, %s18
      // Predicated region
      $region57: #{scaled_dot_product.2} parent=5 // pred_check
        %p458 = pneg %p457
      $region58: #{scaled_dot_product.2} parent=5 // pred_check_branch
        %460 = sbr.rel (%p458) target = $region60
      $region59: #{scaled_dot_product.2} parent=5 // pred_region
        %s461 = ssub.s32 %s18, 2
        // Predicated region
        $region61: #{scaled_dot_product.2} parent=59 // pred_check
          %p462 = pneg %p163
        $region62: #{scaled_dot_product.2} parent=59 // pred_check_branch
          %464 = sbr.rel (%p462) target = $region64
        $region63: #{scaled_dot_product.2} parent=59 // pred_region
          %s465 = sand.u32 %s148, 1
          %s466 = scalar_lea.sflag [#allocation5], %s465
          %s467 = sand.u32 %s148, 1
          %s468 = smul.addr %s467, 8
          %s469 = scalar_lea.vmem [#allocation9], %s468
          %470 = dma.done %s466, 128
        $region64: #{scaled_dot_product.2} parent=59 // pred_fallthru
          _
      $region60: #{scaled_dot_product.2} parent=5 // pred_fallthru
        _
    $region6: #{scaled_dot_product.2} parent=1 // loop_footer
      %s22 = sadd.s32 1, %s18
    $region7: #{scaled_dot_product.2} parent=1 // loop_footer_branch
      %17 = sbr.rel target = $region3
    $region8: #{scaled_dot_product.2} parent=1 // loop_exit
      _
    %471 = vsyncpa [#allocation4], 1
    %s472 = scalar_lea.sflag [#allocation4], 1
    %473 = vsyncpa %s472, 1
    %474 = vsyncpa [#allocation7], 1
    %s475 = scalar_lea.sflag [#allocation7], 1
    %476 = vsyncpa %s475, 1
    %477 = vsyncpa [#allocation5], 1
    %s478 = scalar_lea.sflag [#allocation5], 1
    %479 = vsyncpa %s478, 1

// kernel: scaled_dot_product.3
$region0: #{scaled_dot_product.3}
  #allocation0 [shape = 'u32[]', space=smem, size = 0x4, offset = 0x4, fixed_abs, tag = 'smem constant byte address 0x4 - core index']
  #allocation1 [shape = 'u32[144,128]{1,0:T(1,128)}', space=vmem, size = 0x12000, scoped, tag = 'internal scratch']
  #allocation2 [shape = 'bf16[16,128]{1,0:T(16,128)(2,1)}', space=vmem, size = 0x1000, scoped, tag = 'scratch operand']
  #allocation3 [shape = 'f32[16,1]{1,0:T(8,128)}', space=vmem, size = 0x2000, scoped, tag = 'scratch operand']
  #allocation4 [shape = 'f32[16,1]{1,0:T(8,128)}', space=vmem, size = 0x2000, scoped, tag = 'scratch operand']
  #allocation5 [shape = 'f32[16,128]{1,0:T(8,128)}', space=vmem, size = 0x2000, scoped, tag = 'scratch operand']
  %s0 = inlined_call_operand.hbm [shape: f32[2,16,32], index: 0, kind: input, shape index: {}]
  %s1 = inlined_call_operand.hbm [shape: f32[32,128], index: 1, kind: input, shape index: {}]
  %s2 = inlined_call_operand.hbm [shape: f32[1,128], index: 2, kind: input, shape index: {}]
  %s3 = inlined_call_operand.hbm [shape: bf16[2,2,16,128], index: 3, kind: input, shape index: {}, may-alias: {3,4}]
  %s4 = inlined_call_operand.hbm [shape: bf16[2,2,16,128], index: 4, kind: input, shape index: {}, may-alias: {3,4}]
  %s5 = inlined_call_operand.hbm [shape: f32[2,16,128], index: 5, kind: output, shape index: {}]
  %s6 = sld [smem:[#allocation0]]
  $region81: #{scaled_dot_product.3} parent=0
    _
  %s8 = ssub.s32 1, %s6
  %s9 = scalar_select 0, %s8, %s6
  $region1: #{scaled_dot_product.3} parent=0
    #allocation6 [shape = 'u8[16384]{0}', space=vmem, size = 0x4000, scoped, tag = 'input window, operand 0']
    #allocation7 [shape = 's32[2]{0}', space=sflag, size = 0x8, scoped, tag = 'scoped memory for scaled_dot_product.3']
    #allocation8 [shape = 's32[2]{0}', space=sflag, size = 0x8, scoped, tag = 'scoped memory for scaled_dot_product.3']
    #allocation9 [shape = 'u8[16384]{0}', space=vmem, size = 0x4000, scoped, tag = 'input window, operand 1, single buffered']
    #allocation10 [shape = 's32[1]{0}', space=sflag, size = 0x4, scoped, tag = 'scoped memory for scaled_dot_product.3']
    #allocation11 [shape = 'u8[512]{0}', space=vmem, size = 0x400, scoped, tag = 'input window, operand 2, single buffered']
    #allocation12 [shape = 'u8[8192]{0}', space=vmem, size = 0x2000, scoped, tag = 'input window, operand 3']
    #allocation13 [shape = 's32[2]{0}', space=sflag, size = 0x8, scoped, tag = 'scoped memory for scaled_dot_product.3']
    #allocation14 [shape = 'u8[8192]{0}', space=vmem, size = 0x2000, scoped, tag = 'input window, operand 4']
    #allocation15 [shape = 'u8[16384]{0}', space=vmem, size = 0x4000, scoped, tag = 'output window, operand 0']
    %10 = vsyncpa [#allocation7], 0
    %s11 = scalar_lea.sflag [#allocation7], 1
    %12 = vsyncpa %s11, 0
    %13 = vsyncpa [#allocation10], 0
    %14 = vsyncpa [#allocation13], 0
    %s15 = scalar_lea.sflag [#allocation13], 1
    %16 = vsyncpa %s15, 0
    %17 = vsyncpa [#allocation8], 0
    %s18 = scalar_lea.sflag [#allocation8], 1
    %19 = vsyncpa %s18, 0
    loop: start=0, step=1, limit=4
    $region2: #{scaled_dot_product.3} parent=1 // loop_pre_header
      _
    $region3: #{scaled_dot_product.3} parent=1 // loop_header
      %s21 = sphi 0, %s25
      %p22 = scmp.ge.s32.totalorder %s21, 4
      %s28 = sphi 0, %s47
      %s29 = sphi 0, %s43
      %s30 = sphi 0, %s39
      %s31 = sphi 0, %s28
      %s32 = sphi 0, %s29
      %s33 = sphi 0, %s30
      %s34 = sphi 0, %s31
      %s35 = sphi 0, %s32
      %s36 = sphi 0, %s33
      %s52 = sphi 0, %s54
      %s55 = sphi 0, %s52
      %s56 = sphi 0, %s55
      %s72 = sphi 0, %s56
      %s76 = sphi 0, %s76
      %s78 = sphi 0, %s76
      %s79 = sphi 0, %s78
      %s93 = sphi 0, %s79
      %s97 = sphi 0, %s97
      %s99 = sphi 0, %s97
      %s100 = sphi 0, %s99
      %s114 = sphi 0, %s100
      %s122 = sphi 0, %s124
      %s125 = sphi 0, %s122
      %s126 = sphi 0, %s125
      %s142 = sphi 0, %s126
      %s150 = sphi 0, %s152
      %s153 = sphi 0, %s150
      %s154 = sphi 0, %s153
      %s170 = sphi 0, %s154
      %s178 = sphi 0, %s180
      %s181 = sphi 0, %s178
      %s182 = sphi 0, %s181
      %s198 = sphi 0, %s182
    $region4: #{scaled_dot_product.3} parent=1 // loop_header_branch
      %24 = sbr.rel (%p22) target = $region8
    $region5: #{scaled_dot_product.3} parent=1 // loop_body
      %s26 = ssub.s32 %s21, 1
      %s27 = ssub.s32 %s21, 2
      %s37 = sadd.s32 1, %s30
      %p38 = scmp.ge.s32.totalorder %s37, 1
      %s39 = scalar_select %p38, 0, %s37
      %s40 = sadd.s32 1, %s29
      %s41 = scalar_select %p38, %s40, %s29
      %p42 = scmp.ge.s32.totalorder %s41, 1
      %s43 = scalar_select %p42, 0, %s41
      %s44 = sadd.s32 1, %s28
      %s45 = scalar_select %p42, %s44, %s28
      %p46 = scmp.ge.s32.totalorder %s45, 2
      %s47 = scalar_select %p46, 0, %s45
      %s48 = ssub.s32 %s28, %s47
      %s49 = ssub.s32 %s29, %s43
      %s50 = sor.u32 %s48, %s49
      %p51 = scmp.eq.s32.totalorder %s50, 0
      %s53 = sadd.s32 %s52, 1
      %s54 = scalar_select %p51, %s52, %s53
      %p57 = pneg %p51
      %p58 = scmp.eq.s32.totalorder %s21, 1
      %p59 = por %p57, %p58
      %p60 = scmp.ne.s32.totalorder %s52, %s55
      %p61 = scmp.eq.s32.totalorder %s21, 0
      %p62 = por %p60, %p61
      %p63 = scmp.ne.s32.totalorder %s52, %s55
      %p64 = scmp.eq.s32.totalorder %s26, 1
      %p65 = por %p63, %p64
      %p66 = scmp.ne.s32.totalorder %s55, %s56
      %p67 = scmp.eq.s32.totalorder %s26, 0
      %p68 = por %p66, %p67
      %p69 = scmp.ne.s32.totalorder %s55, %s56
      %p70 = scmp.eq.s32.totalorder %s27, 1
      %p71 = por %p69, %p70
      %p73 = scmp.ne.s32.totalorder %s56, %s72
      %p74 = scmp.eq.s32.totalorder %s27, 0
      %p75 = por %p73, %p74
      %s77 = sadd.s32 %s76, 1
      %p80 = scmp.eq.s32.totalorder %s21, 1
      %p81 = scmp.ne.s32.totalorder %s76, %s78
      %p82 = scmp.eq.s32.totalorder %s21, 0
      %p83 = por %p81, %p82
      %p84 = scmp.ne.s32.totalorder %s76, %s78
      %p85 = scmp.eq.s32.totalorder %s26, 1
      %p86 = por %p84, %p85
      %p87 = scmp.ne.s32.totalorder %s78, %s79
      %p88 = scmp.eq.s32.totalorder %s26, 0
      %p89 = por %p87, %p88
      %p90 = scmp.ne.s32.totalorder %s78, %s79
      %p91 = scmp.eq.s32.totalorder %s27, 1
      %p92 = por %p90, %p91
      %p94 = scmp.ne.s32.totalorder %s79, %s93
      %p95 = scmp.eq.s32.totalorder %s27, 0
      %p96 = por %p94, %p95
      %s98 = sadd.s32 %s97, 1
      %p101 = scmp.eq.s32.totalorder %s21, 1
      %p102 = scmp.ne.s32.totalorder %s97, %s99
      %p103 = scmp.eq.s32.totalorder %s21, 0
      %p104 = por %p102, %p103
      %p105 = scmp.ne.s32.totalorder %s97, %s99
      %p106 = scmp.eq.s32.totalorder %s26, 1
      %p107 = por %p105, %p106
      %p108 = scmp.ne.s32.totalorder %s99, %s100
      %p109 = scmp.eq.s32.totalorder %s26, 0
      %p110 = por %p108, %p109
      %p111 = scmp.ne.s32.totalorder %s99, %s100
      %p112 = scmp.eq.s32.totalorder %s27, 1
      %p113 = por %p111, %p112
      %p115 = scmp.ne.s32.totalorder %s100, %s114
      %p116 = scmp.eq.s32.totalorder %s27, 0
      %p117 = por %p115, %p116
      %s118 = ssub.s32 %s28, %s47
      %s119 = ssub.s32 %s30, %s39
      %s120 = sor.u32 %s118, %s119
      %p121 = scmp.eq.s32.totalorder %s120, 0
      %s123 = sadd.s32 %s122, 1
      %s124 = scalar_select %p121, %s122, %s123
      %p127 = pneg %p121
      %p128 = scmp.eq.s32.totalorder %s21, 1
      %p129 = por %p127, %p128
      %p130 = scmp.ne.s32.totalorder %s122, %s125
      %p131 = scmp.eq.s32.totalorder %s21, 0
      %p132 = por %p130, %p131
      %p133 = scmp.ne.s32.totalorder %s122, %s125
      %p134 = scmp.eq.s32.totalorder %s26, 1
      %p135 = por %p133, %p134
      %p136 = scmp.ne.s32.totalorder %s125, %s126
      %p137 = scmp.eq.s32.totalorder %s26, 0
      %p138 = por %p136, %p137
      %p139 = scmp.ne.s32.totalorder %s125, %s126
      %p140 = scmp.eq.s32.totalorder %s27, 1
      %p141 = por %p139, %p140
      %p143 = scmp.ne.s32.totalorder %s126, %s142
      %p144 = scmp.eq.s32.totalorder %s27, 0
      %p145 = por %p143, %p144
      %s146 = ssub.s32 %s28, %s47
      %s147 = ssub.s32 %s30, %s39
      %s148 = sor.u32 %s146, %s147
      %p149 = scmp.eq.s32.totalorder %s148, 0
      %s151 = sadd.s32 %s150, 1
      %s152 = scalar_select %p149, %s150, %s151
      %p155 = pneg %p149
      %p156 = scmp.eq.s32.totalorder %s21, 1
      %p157 = por %p155, %p156
      %p158 = scmp.ne.s32.totalorder %s150, %s153
      %p159 = scmp.eq.s32.totalorder %s21, 0
      %p160 = por %p158, %p159
      %p161 = scmp.ne.s32.totalorder %s150, %s153
      %p162 = scmp.eq.s32.totalorder %s26, 1
      %p163 = por %p161, %p162
      %p164 = scmp.ne.s32.totalorder %s153, %s154
      %p165 = scmp.eq.s32.totalorder %s26, 0
      %p166 = por %p164, %p165
      %p167 = scmp.ne.s32.totalorder %s153, %s154
      %p168 = scmp.eq.s32.totalorder %s27, 1
      %p169 = por %p167, %p168
      %p171 = scmp.ne.s32.totalorder %s154, %s170
      %p172 = scmp.eq.s32.totalorder %s27, 0
      %p173 = por %p171, %p172
      %s174 = ssub.s32 %s28, %s47
      %s175 = ssub.s32 %s29, %s43
      %s176 = sor.u32 %s174, %s175
      %p177 = scmp.eq.s32.totalorder %s176, 0
      %s179 = sadd.s32 %s178, 1
      %s180 = scalar_select %p177, %s178, %s179
      %p183 = pneg %p177
      %p184 = scmp.eq.s32.totalorder %s21, 1
      %p185 = por %p183, %p184
      %p186 = scmp.ne.s32.totalorder %s178, %s181
      %p187 = scmp.eq.s32.totalorder %s21, 0
      %p188 = por %p186, %p187
      %p189 = scmp.ne.s32.totalorder %s178, %s181
      %p190 = scmp.eq.s32.totalorder %s26, 1
      %p191 = por %p189, %p190
      %p192 = scmp.ne.s32.totalorder %s181, %s182
      %p193 = scmp.eq.s32.totalorder %s26, 0
      %p194 = por %p192, %p193
      %p195 = scmp.ne.s32.totalorder %s181, %s182
      %p196 = scmp.eq.s32.totalorder %s27, 1
      %p197 = por %p195, %p196
      %p199 = scmp.ne.s32.totalorder %s182, %s198
      %p200 = scmp.eq.s32.totalorder %s27, 0
      %p201 = por %p199, %p200
      %p202 = scmp.le.s32.totalorder 1, %s21
      %p203 = scmp.lt.s32.totalorder %s21, 3
      %p204 = pnand %p202, %p203
      %p205 = pneg %p204
      // Predicated region
      $region9: #{scaled_dot_product.3} parent=5 // pred_check
        _
      $region10: #{scaled_dot_product.3} parent=5 // pred_check_branch
        %207 = sbr.rel (%p204) target = $region12
      $region11: #{scaled_dot_product.3} parent=5 // pred_region
        %s208 = ssub.s32 %s21, 1
        // Predicated region
        $region13: #{scaled_dot_product.3} parent=11 // pred_check
          %p209 = pneg %p89
        $region14: #{scaled_dot_product.3} parent=11 // pred_check_branch
          %211 = sbr.rel (%p209) target = $region16
        $region15: #{scaled_dot_product.3} parent=11 // pred_region
          %s213 = ssub.s32 512, 512
          %214 = vsyncadd [#allocation10], %s213
          %s215 = sshll.u32 [#allocation9], 4
          %s216 = int_to_ptr.vmem [resolvable:$true] %s215
          %221 = dma.hbm_to_vmem [thread:$0]  %s1, 512, %s216, [#allocation10], 128, 128, 8
        $region16: #{scaled_dot_product.3} parent=11 // pred_fallthru
          _
        // Predicated region
        $region17: #{scaled_dot_product.3} parent=11 // pred_check
          %p222 = pneg %p110
        $region18: #{scaled_dot_product.3} parent=11 // pred_check_branch
          %224 = sbr.rel (%p222) target = $region20
        $region19: #{scaled_dot_product.3} parent=11 // pred_region
          %s226 = ssub.s32 16, 16
          %227 = vsyncadd [#allocation10], %s226
          %s229 = sshll.u32 [#allocation11], 4
          %s230 = int_to_ptr.vmem [resolvable:$true] %s229
          %232 = dma.hbm_to_vmem [thread:$0]  %s2, 16, %s230, [#allocation10]
        $region20: #{scaled_dot_product.3} parent=11 // pred_fallthru
          _
      $region12: #{scaled_dot_product.3} parent=5 // pred_fallthru
        _
      %p233 = scmp.lt.s32.totalorder %s21, 2
      // Predicated region
      $region21: #{scaled_dot_product.3} parent=5 // pred_check
        %p234 = pneg %p233
      $region22: #{scaled_dot_product.3} parent=5 // pred_check_branch
        %236 = sbr.rel (%p234) target = $region24
      $region23: #{scaled_dot_product.3} parent=5 // pred_region
        // Predicated region
        $region25: #{scaled_dot_product.3} parent=23 // pred_check
          %p237 = pneg %p62
        $region26: #{scaled_dot_product.3} parent=23 // pred_check_branch
          %239 = sbr.rel (%p237) target = $region28
        $region27: #{scaled_dot_product.3} parent=23 // pred_region
          %s240 = sand.u32 %s52, 1
          %s241 = scalar_lea.sflag [#allocation7], %s240
          %s242 = sand.u32 %s52, 1
          %s243 = smul.addr %s242, 16
          %s244 = scalar_lea.vmem [#allocation6], %s243
          %s245 = smul.u32 2, %s29
          %s247 = ssub.s32 256, 256
          %248 = vsyncadd %s241, %s247
          %s249 = smul.addr %s28, 2
          %s250 = sadd.s32 %s245, %s249
          %s251 = smul.addr %s250, 128
          %s252 = scalar_lea.hbm %s0, %s251
          %s253 = sshll.u32 %s244, 4
          %s254 = int_to_ptr.vmem [resolvable:$true] %s253
          %259 = dma.hbm_to_vmem [thread:$0]  %s252, 256, %s254, %s241, 128, 128, 8
        $region28: #{scaled_dot_product.3} parent=23 // pred_fallthru
          _
        // Predicated region
        $region29: #{scaled_dot_product.3} parent=23 // pred_check
          %p260 = pneg %p132
        $region30: #{scaled_dot_product.3} parent=23 // pred_check_branch
          %262 = sbr.rel (%p260) target = $region32
        $region31: #{scaled_dot_product.3} parent=23 // pred_region
          %s263 = sand.u32 %s21, 1
          %s264 = scalar_lea.sflag [#allocation13], %s263
          %s265 = sand.u32 %s122, 1
          %s266 = smul.addr %s265, 8
          %s267 = scalar_lea.vmem [#allocation12], %s266
          %s268 = smul.u32 2, %s30
          %s270 = ssub.s32 128, 128
          %271 = vsyncadd %s264, %s270
          %s272 = smul.addr %s28, 2
          %s273 = sadd.s32 %s268, %s272
          %s274 = smul.addr %s273, 64
          %s275 = scalar_lea.hbm %s3, %s274
          %s276 = sshll.u32 %s267, 4
          %s277 = int_to_ptr.vmem [resolvable:$true] %s276
          %282 = dma.hbm_to_vmem [thread:$0]  %s275, 128, %s277, %s264, 64, 64, 4
        $region32: #{scaled_dot_product.3} parent=23 // pred_fallthru
          _
        // Predicated region
        $region33: #{scaled_dot_product.3} parent=23 // pred_check
          %p283 = pneg %p160
        $region34: #{scaled_dot_product.3} parent=23 // pred_check_branch
          %285 = sbr.rel (%p283) target = $region36
        $region35: #{scaled_dot_product.3} parent=23 // pred_region
          %s286 = sand.u32 %s21, 1
          %s287 = scalar_lea.sflag [#allocation13], %s286
          %s288 = sand.u32 %s150, 1
          %s289 = smul.addr %s288, 8
          %s290 = scalar_lea.vmem [#allocation14], %s289
          %s291 = smul.u32 2, %s30
          %s293 = ssub.s32 128, 128
          %294 = vsyncadd %s287, %s293
          %s295 = smul.addr %s28, 2
          %s296 = sadd.s32 %s291, %s295
          %s297 = sadd.s32 %s296, 4
          %s298 = smul.addr %s297, 64
          %s299 = scalar_lea.hbm %s4, %s298
          %s300 = sshll.u32 %s290, 4
          %s301 = int_to_ptr.vmem [resolvable:$true] %s300
          %306 = dma.hbm_to_vmem [thread:$0]  %s299, 128, %s301, %s287, 64, 64, 4
        $region36: #{scaled_dot_product.3} parent=23 // pred_fallthru
          _
      $region24: #{scaled_dot_product.3} parent=5 // pred_fallthru
        _
      %p307 = scmp.le.s32.totalorder 1, %s21
      %p308 = scmp.lt.s32.totalorder %s21, 3
      %p309 = pnand %p307, %p308
      %p310 = pneg %p309
      // Predicated region
      $region37: #{scaled_dot_product.3} parent=5 // pred_check
        _
      $region38: #{scaled_dot_product.3} parent=5 // pred_check_branch
        %312 = sbr.rel (%p309) target = $region40
      $region39: #{scaled_dot_product.3} parent=5 // pred_region
        %s313 = ssub.s32 %s21, 1
        %s314 = sand.u32 %s55, 1
        %s315 = scalar_lea.sflag [#allocation7], %s314
        %s316 = sand.u32 %s55, 1
        %s317 = smul.addr %s316, 16
        %s318 = scalar_lea.vmem [#allocation6], %s317
        // Predicated region
        $region41: #{scaled_dot_product.3} parent=39 // pred_check
          %p319 = pneg %p68
        $region42: #{scaled_dot_product.3} parent=39 // pred_check_branch
          %321 = sbr.rel (%p319) target = $region44
        $region43: #{scaled_dot_product.3} parent=39 // pred_region
          %322 = dma.done %s315, 256
        $region44: #{scaled_dot_product.3} parent=39 // pred_fallthru
          _
        // Predicated region
        $region45: #{scaled_dot_product.3} parent=39 // pred_check
          %p323 = pneg %p89
        $region46: #{scaled_dot_product.3} parent=39 // pred_check_branch
          %325 = sbr.rel (%p323) target = $region48
        $region47: #{scaled_dot_product.3} parent=39 // pred_region
          %326 = dma.done [#allocation10], 512
        $region48: #{scaled_dot_product.3} parent=39 // pred_fallthru
          _
        // Predicated region
        $region49: #{scaled_dot_product.3} parent=39 // pred_check
          %p327 = pneg %p110
        $region50: #{scaled_dot_product.3} parent=39 // pred_check_branch
          %329 = sbr.rel (%p327) target = $region52
        $region51: #{scaled_dot_product.3} parent=39 // pred_region
          %330 = dma.done [#allocation10], 16
        $region52: #{scaled_dot_product.3} parent=39 // pred_fallthru
          _
        %s331 = sand.u32 %s26, 1
        %s332 = scalar_lea.sflag [#allocation13], %s331
        %s333 = sand.u32 %s125, 1
        %s334 = smul.addr %s333, 8
        %s335 = scalar_lea.vmem [#allocation12], %s334
        // Predicated region
        $region53: #{scaled_dot_product.3} parent=39 // pred_check
          %p336 = pneg %p138
        $region54: #{scaled_dot_product.3} parent=39 // pred_check_branch
          %338 = sbr.rel (%p336) target = $region56
        $region55: #{scaled_dot_product.3} parent=39 // pred_region
          %339 = dma.done %s332, 128
        $region56: #{scaled_dot_product.3} parent=39 // pred_fallthru
          _
        %s340 = sand.u32 %s26, 1
        %s341 = scalar_lea.sflag [#allocation13], %s340
        %s342 = sand.u32 %s153, 1
        %s343 = smul.addr %s342, 8
        %s344 = scalar_lea.vmem [#allocation14], %s343
        // Predicated region
        $region57: #{scaled_dot_product.3} parent=39 // pred_check
          %p345 = pneg %p166
        $region58: #{scaled_dot_product.3} parent=39 // pred_check_branch
          %347 = sbr.rel (%p345) target = $region60
        $region59: #{scaled_dot_product.3} parent=39 // pred_region
          %348 = dma.done %s341, 128
        $region60: #{scaled_dot_product.3} parent=39 // pred_fallthru
          _
        %s349 = sand.u32 %s55, 1
        %s350 = scalar_lea.sflag [#allocation7], %s349
        %s351 = sand.u32 %s55, 1
        %s352 = smul.addr %s351, 16
        %s353 = scalar_lea.vmem [#allocation6], %s352
        %p354 = pneg %p68
        %p355 = pneg %p65
        %p356 = pneg %p89
        %p357 = pneg %p86
        %p358 = pneg %p110
        %p359 = pneg %p107
        %s360 = sand.u32 %s26, 1
        %s361 = scalar_lea.sflag [#allocation13], %s360
        %s362 = sand.u32 %s125, 1
        %s363 = smul.addr %s362, 8
        %s364 = scalar_lea.vmem [#allocation12], %s363
        %p365 = pneg %p138
        %p366 = pneg %p135
        %s367 = sand.u32 %s26, 1
        %s368 = scalar_lea.sflag [#allocation13], %s367
        %s369 = sand.u32 %s153, 1
        %s370 = smul.addr %s369, 8
        %s371 = scalar_lea.vmem [#allocation14], %s370
        %p372 = pneg %p166
        %p373 = pneg %p163
        %p374 = pneg %p194
        %p375 = pneg %p191
        %s376 = sand.u32 %s181, 1
        %s377 = scalar_lea.sflag [#allocation8], %s376
        %s378 = sand.u32 %s181, 1
        %s379 = smul.addr %s378, 16
        %s380 = scalar_lea.vmem [#allocation15], %s379
        %s381 = smul.u32 2, %s32
        %s382 = smul.u32 2, %s33
        %s383 = smul.u32 2, %s33
        %s384 = smul.u32 2, %s32
        %p386 = scmp.eq.s32.totalorder %s33, 0
        // Predicated region
        $region61: #{scaled_dot_product.3} parent=39 // pred_check
          %p387 = pneg %p386
        $region62: #{scaled_dot_product.3} parent=39 // pred_check_branch
          %389 = sbr.rel (%p387) target = $region64
        $region63: #{scaled_dot_product.3} parent=39 // pred_region
          %v390 = vld [vmem:[%s318] sm:$0xff]
          %v391 = vld [vmem:[%s318 + $0x8] sm:$0xff]
          %v392 = vld [vmem:[#allocation9] sm:$0xff]
          %v393 = vld [vmem:[#allocation9 + $0x8] sm:$0xff]
          %v394 = vld [vmem:[#allocation9 + $0x10] sm:$0xff]
          %v395 = vld [vmem:[#allocation9 + $0x18] sm:$0xff]
          %v396 = vld [vmem:[#allocation11] sm:$0x1]
          %v398 = vlaneseq
          %v399 = vshrl.u32 %v398, 7
          %v400 = vsub.s32 0, %v399
          %v401 = vrot.slane %v396, %v400
          %vm403 = vcmask 261120
          %v405 = vsel %vm403, %v390, 0
          %v408 = vsel %vm403, %v391, 0
          %410 = vmatprep.subr.mxu0 0.0
          %411 = vmatpush1.msra.mxu0 %v392
          %412 = vmatprep.subr.mxu0 0.0
          %413 = vmatpush1.msra.mxu0 %v393
          %414 = vmatprep.subr.mxu0 0.0
          %415 = vmatpush1.msra.mxu0 %v394
          %416 = vmatprep.subr.mxu0 0.0
          %417 = vmatpush1.msra.mxu0 %v395
          %418 = vmatprep.subr.mxu0 0.0
          %419 = vmatpush1.msra.mxu0 0.0
          %420 = vmatprep.subr.mxu0 0.0
          %421 = vmatpush1.msra.mxu0 0.0
          %422 = vmatprep.subr.mxu0 0.0
          %423 = vmatpush1.msra.mxu0 0.0
          %424 = vmatprep.subr.mxu0 0.0
          %425 = vmatpush1.msra.mxu0 0.0
          %426 = vmatprep.subr.mxu0 0.0
          %427 = vmatpush1.msra.mxu0 0.0
          %428 = vmatprep.subr.mxu0 0.0
          %429 = vmatpush1.msra.mxu0 0.0
          %430 = vmatprep.subr.mxu0 0.0
          %431 = vmatpush1.msra.mxu0 0.0
          %432 = vmatprep.subr.mxu0 0.0
          %433 = vmatpush1.msra.mxu0 0.0
          %434 = vmatprep.subr.mxu0 0.0
          %435 = vmatpush1.msra.mxu0 0.0
          %436 = vmatprep.subr.mxu0 0.0
          %437 = vmatpush1.msra.mxu0 0.0
          %438 = vmatprep.subr.mxu0 0.0
          %439 = vmatpush1.msra.mxu0 0.0
          %440 = vmatprep.subr.mxu0 0.0
          %441 = vmatpush1.msra.mxu0 0.0
          %442 = vmatprep.subr.mxu0 0.0
          %443 = vmatpush1.msra.mxu0 0.0
          %444 = vmatprep.subr.mxu0 0.0
          %445 = vmatpush1.msra.mxu0 0.0
          %446 = vmatprep.subr.mxu0 0.0
          %447 = vmatpush1.msra.mxu0 0.0
          %448 = vmatprep.subr.mxu0 0.0
          %449 = vmatpush1.msra.mxu0 0.0
          %450 = vmatprep.subr.mxu0 0.0
          %451 = vmatpush1.msra.mxu0 0.0
          %452 = vmatprep.subr.mxu0 0.0
          %453 = vmatpush1.msra.mxu0 0.0
          %454 = vmatprep.subr.mxu0 0.0
          %455 = vmatpush1.msra.mxu0 0.0
          %456 = vmatprep.subr.mxu0 0.0
          %457 = vmatpush1.msra.mxu0 0.0
          %458 = vmatprep.subr.mxu0 0.0
          %459 = vmatpush1.msra.mxu0 0.0
          %460 = vmatprep.subr.mxu0 0.0
          %461 = vmatpush1.msra.mxu0 0.0
          %462 = vmatprep.subr.mxu0 0.0
          %463 = vmatpush1.msra.mxu0 0.0
          %464 = vmatprep.subr.mxu0 0.0
          %465 = vmatpush1.msra.mxu0 0.0
          %466 = vmatprep.subr.mxu0 0.0
          %467 = vmatpush1.msra.mxu0 0.0
          %468 = vmatprep.subr.mxu0 0.0
          %469 = vmatpush1.msra.mxu0 0.0
          %470 = vmatprep.subr.mxu0 0.0
          %471 = vmatpush1.msra.mxu0 0.0
          %472 = vmatprep.subr.mxu0 0.0
          %473 = vmatpush1.msra.mxu0 0.0
          %474 = vmatprep.mubr.f32.mxu0 0.0
          %475 = vmatmul.mubr.f32.gmra.mrb[0].mxu0 %v405
          %v476 = vpop.f32.mrb[0].mxu0
          %v477 = vadd.f32 %v401, %v476
          %v478 = vpop.f32.mrb[0].mxu0
          %479 = vmatprep.mubr.f32.mxu0 0.0
          %480 = vmatmul.mubr.f32.gmra.mrb[0].mxu0 %v408
          %v481 = vpop.f32.mrb[0].mxu0
          %v482 = vadd.f32 %v401, %v481
          %v483 = vpop.f32.mrb[0].mxu0
          %484 = vdwg.mxu0
          %v485 = vpack.c.bf16 %v482, %v477
          %486 = vst [vmem:[#allocation2] sm:$0xff] %v485
          %vm487 = vcmask 7168
          %488 = vst.msk [vmem:[#allocation3] sm:$0xff] %vm487, -inf
          %489 = vst.msk [vmem:[#allocation3 + $0x8] sm:$0xff] %vm487, -inf
          %490 = vst.msk [vmem:[#allocation4] sm:$0xff] %vm487, 0.0
          %491 = vst.msk [vmem:[#allocation4 + $0x8] sm:$0xff] %vm487, 0.0
          %492 = vst [vmem:[#allocation5] sm:$0xff] 0.0
          %493 = vst [vmem:[#allocation5 + $0x8] sm:$0xff] 0.0
        $region64: #{scaled_dot_product.3} parent=39 // pred_fallthru
          _
        %v494 = vld [vmem:[#allocation2] sm:$0xff]
        %v495 = vld [vmem:[%s335] sm:$0xf]
        %v496 = vld [vmem:[%s335 + $0x4] sm:$0xf]
        %v499 = vunpack.c.l.b16 %v495
        %v500 = vunpack.c.l.b16 %v496
        %v501 = vpack.c.b16 %v500, %v499
        %503 = vmatprep.subr.bf16.mxu0 0
        %504 = vmatpush1.bf16.xpose.msra.mxu0 %v501
        %505 = vmatprep.subr.bf16.mxu0 0
        %506 = vmatpush1.bf16.xpose.msra.mxu0 0
        %507 = vmatprep.subr.bf16.mxu0 0
        %508 = vmatpush1.bf16.xpose.msra.mxu0 0
        %509 = vmatprep.subr.bf16.mxu0 0
        %510 = vmatpush1.bf16.xpose.msra.mxu0 0
        %511 = vmatprep.subr.bf16.mxu0 0
        %512 = vmatpush1.bf16.xpose.msra.mxu0 0
        %513 = vmatprep.subr.bf16.mxu0 0
        %514 = vmatpush1.bf16.xpose.msra.mxu0 0
        %515 = vmatprep.subr.bf16.mxu0 0
        %516 = vmatpush1.bf16.xpose.msra.mxu0 0
        %517 = vmatprep.subr.bf16.mxu0 0
        %518 = vmatpush1.bf16.xpose.msra.mxu0 0
        %519 = vmatprep.subr.bf16.mxu0 0
        %520 = vmatpush1.bf16.xpose.msra.mxu0 0
        %521 = vmatprep.subr.bf16.mxu0 0
        %522 = vmatpush1.bf16.xpose.msra.mxu0 0
        %523 = vmatprep.subr.bf16.mxu0 0
        %524 = vmatpush1.bf16.xpose.msra.mxu0 0
        %525 = vmatprep.subr.bf16.mxu0 0
        %526 = vmatpush1.bf16.xpose.msra.mxu0 0
        %527 = vmatprep.subr.bf16.mxu0 0
        %528 = vmatpush1.bf16.xpose.msra.mxu0 0
        %529 = vmatprep.subr.bf16.mxu0 0
        %530 = vmatpush1.bf16.xpose.msra.mxu0 0
        %531 = vmatprep.subr.bf16.mxu0 0
        %532 = vmatpush1.bf16.xpose.msra.mxu0 0
        %533 = vmatprep.subr.bf16.mxu0 0
        %534 = vmatpush1.bf16.xpose.msra.mxu0 0
        %535 = vmatprep.mubr.bf16.mxu0 0
        %536 = vmatmul.mubr.bf16.gmra.mrb[0].mxu0 %v494
        %v537 = vpop.f32.mrb[0].mxu0
        %v538 = vadd.f32 0.0, %v537
        %v539 = vpop.f32.mrb[0].mxu0
        %v540 = vpop.f32.mrb[0].mxu0
        %v541 = vadd.f32 0.0, %v540
        %v542 = vpop.f32.mrb[0].mxu0
        %543 = vdwg.mxu0
        %s544 = smul.u32 %s33, 16
        %v545 = vlaneseq
        %v546 = vand.u32 %v545, 127
        %v547 = vstv %s544
        %v548 = vadd.s32 %v547, %v546
        %vm549 = vcmp.lt.s32.totalorder %v548, 8
        %v550 = vsel %vm549, %v538, -1e+30
        %v551 = vsel %vm549, %v541, -1e+30
        %v552 = vld [vmem:[#allocation3] sm:$0xff]
        %v553 = vld [vmem:[#allocation3 + $0x8] sm:$0xff]
        %vm554 = vcmask 130048
        %v555 = vsel %vm554, %v550, -inf
        %556 = vmax.xlane.f32.xlu0 %v555
        %v557 = vpop.xlane.xlu0 %556
        %v558 = vsel %vm554, %v551, -inf
        %559 = vmax.xlane.f32.xlu0 %v558
        %v560 = vpop.xlane.xlu0 %559
        %v561 = vmax.f32 %v552, %v557
        %v562 = vmax.f32 %v553, %v560
        %v563 = vsub.f32 %v552, %v561
        %v564 = vsub.f32 %v553, %v562
        %v565 = vmul.f32 %v563, 1.442695
        %v566 = vpow.pop %v565
        %v567 = vmul.f32 %v564, 1.442695
        %v568 = vpow.pop %v567
        %570 = vset.pattern.permute.xlu0 0
        %571 = vperm.xlu0 %570, %v561
        %v572 = vpop.permute.xlu0 %571
        %575 = vset.pattern.permute.xlu0 0
        %576 = vperm.xlu0 %575, %v562
        %v577 = vpop.permute.xlu0 %576
        %v579 = vsub.f32 %v550, %v572
        %v580 = vsub.f32 %v551, %v577
        %v581 = vmul.f32 %v579, 1.442695
        %v582 = vpow.pop %v581
        %v583 = vmul.f32 %v580, 1.442695
        %v584 = vpow.pop %v583
        %v585 = vld [vmem:[#allocation4] sm:$0xff]
        %v586 = vld [vmem:[#allocation4 + $0x8] sm:$0xff]
        %v587 = vmul.f32 %v566, %v585
        %v588 = vmul.f32 %v568, %v586
        %v589 = vsel %vm554, %v582, 0.0
        %590 = vadd.xlane.f32.xlu0 %v589
        %v591 = vpop.xlane.xlu0 %590
        %v592 = vsel %vm554, %v584, 0.0
        %593 = vadd.xlane.f32.xlu0 %v592
        %v594 = vpop.xlane.xlu0 %593
        %v595 = vadd.f32 %v587, %v591
        %v596 = vadd.f32 %v588, %v594
        %vm597 = vcmask 7168
        %598 = vst.msk [vmem:[#allocation4] sm:$0xff] %vm597, %v595
        %599 = vst.msk [vmem:[#allocation4 + $0x8] sm:$0xff] %vm597, %v596
        %v600 = vld [vmem:[#allocation5] sm:$0xff]
        %v601 = vld [vmem:[#allocation5 + $0x8] sm:$0xff]
        %603 = vset.pattern.permute.xlu0 0
        %604 = vperm.xlu0 %603, %v566
        %v605 = vpop.permute.xlu0 %604
        %608 = vset.pattern.permute.xlu0 0
        %609 = vperm.xlu0 %608, %v568
        %v610 = vpop.permute.xlu0 %609
        %v612 = vmul.f32 %v605, %v600
        %v613 = vmul.f32 %v610, %v601
        %v614 = vpack.c.bf16 %v584, %v582
        %v615 = vld [vmem:[%s344] sm:$0xf]
        %v616 = vld [vmem:[%s344 + $0x4] sm:$0xf]
        %v619 = vunpack.c.l.b16 %v615
        %v620 = vunpack.c.l.b16 %v616
        %v621 = vpack.c.b16 %v620, %v619
        %v624 = vsel %vm554, %v614, 0
        %626 = vmatprep.subr.bf16.mxu0 0
        %627 = vmatpush1.bf16.msra.mxu0 %v621
        %628 = vmatprep.subr.bf16.mxu0 0
        %629 = vmatpush1.bf16.msra.mxu0 0
        %630 = vmatprep.subr.bf16.mxu0 0
        %631 = vmatpush1.bf16.msra.mxu0 0
        %632 = vmatprep.subr.bf16.mxu0 0
        %633 = vmatpush1.bf16.msra.mxu0 0
        %634 = vmatprep.subr.bf16.mxu0 0
        %635 = vmatpush1.bf16.msra.mxu0 0
        %636 = vmatprep.subr.bf16.mxu0 0
        %637 = vmatpush1.bf16.msra.mxu0 0
        %638 = vmatprep.subr.bf16.mxu0 0
        %639 = vmatpush1.bf16.msra.mxu0 0
        %640 = vmatprep.subr.bf16.mxu0 0
        %641 = vmatpush1.bf16.msra.mxu0 0
        %642 = vmatprep.subr.bf16.mxu0 0
        %643 = vmatpush1.bf16.msra.mxu0 0
        %644 = vmatprep.subr.bf16.mxu0 0
        %645 = vmatpush1.bf16.msra.mxu0 0
        %646 = vmatprep.subr.bf16.mxu0 0
        %647 = vmatpush1.bf16.msra.mxu0 0
        %648 = vmatprep.subr.bf16.mxu0 0
        %649 = vmatpush1.bf16.msra.mxu0 0
        %650 = vmatprep.subr.bf16.mxu0 0
        %651 = vmatpush1.bf16.msra.mxu0 0
        %652 = vmatprep.subr.bf16.mxu0 0
        %653 = vmatpush1.bf16.msra.mxu0 0
        %654 = vmatprep.subr.bf16.mxu0 0
        %655 = vmatpush1.bf16.msra.mxu0 0
        %656 = vmatprep.subr.bf16.mxu0 0
        %657 = vmatpush1.bf16.msra.mxu0 0
        %658 = vmatprep.mubr.bf16.mxu0 0
        %659 = vmatmul.mubr.bf16.gmra.mrb[0].mxu0 %v624
        %v660 = vpop.f32.mrb[0].mxu0
        %v661 = vadd.f32 0.0, %v660
        %v662 = vpop.f32.mrb[0].mxu0
        %v663 = vpop.f32.mrb[0].mxu0
        %v664 = vadd.f32 0.0, %v663
        %v665 = vpop.f32.mrb[0].mxu0
        %666 = vdwg.mxu0
        %v667 = vadd.f32 %v612, %v661
        %v668 = vadd.f32 %v613, %v664
        %669 = vst [vmem:[#allocation5] sm:$0xff] %v667
        %670 = vst [vmem:[#allocation5 + $0x8] sm:$0xff] %v668
        %671 = vst.msk [vmem:[#allocation3] sm:$0xff] %vm597, %v561
        %672 = vst.msk [vmem:[#allocation3 + $0x8] sm:$0xff] %vm597, %v562
        // Predicated region
        $region65: #{scaled_dot_product.3} parent=39 // pred_check
          %p673 = pneg %p386
        $region66: #{scaled_dot_product.3} parent=39 // pred_check_branch
          %675 = sbr.rel (%p673) target = $region68
        $region67: #{scaled_dot_product.3} parent=39 // pred_region
          %v676 = vld [vmem:[#allocation4] sm:$0xff]
          %v677 = vld [vmem:[#allocation4 + $0x8] sm:$0xff]
          %v678 = vrcp.pop %v676
          %v679 = vrcp.pop %v677
          %v680 = vmul.f32 %v676, %v678
          %v681 = vmul.f32 %v677, %v679
          %v682 = vsub.f32 2.0, %v680
          %v683 = vsub.f32 2.0, %v681
          %v684 = vmul.f32 %v678, %v682
          %v685 = vmul.f32 %v679, %v683
          %v686 = vld [vmem:[#allocation5] sm:$0xff]
          %v687 = vld [vmem:[#allocation5 + $0x8] sm:$0xff]
          %689 = vset.pattern.permute.xlu0 0
          %690 = vperm.xlu0 %689, %v684
          %v691 = vpop.permute.xlu0 %690
          %694 = vset.pattern.permute.xlu0 0
          %695 = vperm.xlu0 %694, %v685
          %v696 = vpop.permute.xlu0 %695
          %v698 = vmul.f32 %v686, %v691
          %v699 = vmul.f32 %v687, %v696
          %700 = vst [vmem:[%s380] sm:$0xff] %v698
          %701 = vst [vmem:[%s380 + $0x8] sm:$0xff] %v699
        $region68: #{scaled_dot_product.3} parent=39 // pred_fallthru
          _
        %s702 = sand.u32 %s181, 1
        %s703 = scalar_lea.sflag [#allocation8], %s702
        %s704 = sand.u32 %s181, 1
        %s705 = smul.addr %s704, 16
        %s706 = scalar_lea.vmem [#allocation15], %s705
        // Predicated region
        $region69: #{scaled_dot_product.3} parent=39 // pred_check
          %p707 = pneg %p191
        $region70: #{scaled_dot_product.3} parent=39 // pred_check_branch
          %709 = sbr.rel (%p707) target = $region72
        $region71: #{scaled_dot_product.3} parent=39 // pred_region
          %s710 = smul.u32 2, %s32
          %s712 = ssub.s32 256, 256
          %713 = vsyncadd %s703, %s712
          %s714 = smul.addr %s31, 2
          %s715 = sadd.s32 %s710, %s714
          %s716 = smul.addr %s715, 128
          %s717 = scalar_lea.hbm %s5, %s716
          %s718 = sshll.u32 %s706, 4
          %s719 = int_to_ptr.vmem [resolvable:$true] %s718
          %724 = dma.vmem_to_hbm [thread:$0]  %s719, 256, %s717, %s703, 128, 128, 8
        $region72: #{scaled_dot_product.3} parent=39 // pred_fallthru
          _
      $region40: #{scaled_dot_product.3} parent=5 // pred_fallthru
        _
      %p725 = scmp.le.s32.totalorder 2, %s21
      // Predicated region
      $region73: #{scaled_dot_product.3} parent=5 // pred_check
        %p726 = pneg %p725
      $region74: #{scaled_dot_product.3} parent=5 // pred_check_branch
        %728 = sbr.rel (%p726) target = $region76
      $region75: #{scaled_dot_product.3} parent=5 // pred_region
        %s729 = ssub.s32 %s21, 2
        // Predicated region
        $region77: #{scaled_dot_product.3} parent=75 // pred_check
          %p730 = pneg %p197
        $region78: #{scaled_dot_product.3} parent=75 // pred_check_branch
          %732 = sbr.rel (%p730) target = $region80
        $region79: #{scaled_dot_product.3} parent=75 // pred_region
          %s733 = sand.u32 %s182, 1
          %s734 = scalar_lea.sflag [#allocation8], %s733
          %s735 = sand.u32 %s182, 1
          %s736 = smul.addr %s735, 16
          %s737 = scalar_lea.vmem [#allocation15], %s736
          %738 = dma.done %s734, 256
        $region80: #{scaled_dot_product.3} parent=75 // pred_fallthru
          _
      $region76: #{scaled_dot_product.3} parent=5 // pred_fallthru
        _
    $region6: #{scaled_dot_product.3} parent=1 // loop_footer
      %s25 = sadd.s32 1, %s21
    $region7: #{scaled_dot_product.3} parent=1 // loop_footer_branch
      %20 = sbr.rel target = $region3
    $region8: #{scaled_dot_product.3} parent=1 // loop_exit
      _
    %739 = vsyncpa [#allocation7], 1
    %s740 = scalar_lea.sflag [#allocation7], 1
    %741 = vsyncpa %s740, 1
    %742 = vsyncpa [#allocation10], 1
    %743 = vsyncpa [#allocation13], 1
    %s744 = scalar_lea.sflag [#allocation13], 1
    %745 = vsyncpa %s744, 1
    %746 = vsyncpa [#allocation8], 1
    %s747 = scalar_lea.sflag [#allocation8], 1
    %748 = vsyncpa %s747, 1

</llo_original>
